<compile_context>
chip_gen: v7x
topology: tpu7x:2x2x1
jax: 0.10.0
libtpu: 0.0.40
codegen_flags: <defaults>
</compile_context>

<pallas_src>
import functools
import math

import jax
import jax.numpy as jnp
from jax.experimental import pallas as pl
from jax.experimental.pallas import tpu as pltpu


# ---------------------------------------------------------------------------
# helpers
# ---------------------------------------------------------------------------
def _round_up(v, m):
    return (v + m - 1) // m * m


def _m_tiling(m, cap=512):
    """Row tiling: (tile, padded_rows). tile == full extent when m <= cap (no padding)."""
    if m <= cap:
        return m, m
    for cand in (512, 256, 128, 64, 32, 16, 8):
        if cand <= cap and m % cand == 0:
            return cand, m
    m_pad = _round_up(m, 256)
    return 256, m_pad


def _act_f32(y, act):
    if act == "relu":
        return jnp.maximum(y, 0.0)
    if act == "hswish":                                   # x * relu6(x+3)/6
        return y * (jnp.clip(y + 3.0, 0.0, 6.0) * (1.0 / 6.0))
    if act == "hsigmoid":                                 # relu6(x+3)/6
        return jnp.clip(y + 3.0, 0.0, 6.0) * (1.0 / 6.0)
    return y


# ---------------------------------------------------------------------------
# 1x1 conv: tiled matmul + folded BN + activation (+ fused bf16 residual)
# ---------------------------------------------------------------------------
def _mm_kernel(x_ref, w_ref, sc_ref, sh_ref, *rest, act, has_res):
    if has_res:
        res_ref, o_ref = rest
    else:
        (o_ref,) = rest
    y = jnp.dot(x_ref[...], w_ref[...], preferred_element_type=jnp.float32)
    y = y * sc_ref[...] + sh_ref[...]                       # f32 epilogue
    if has_res:
        y = y + res_ref[...].astype(jnp.float32)
    o_ref[...] = _act_f32(y, act).astype(o_ref.dtype)


def _matmul_bn_act(x, w, sc, sh, residual, *, act):
    """bf16 act((x @ w) * scale + shift [+ residual]). x:(M,K) bf16, w:(K,N) bf16."""
    m, k = x.shape
    n_out = w.shape[1]
    tm, m_pad = _m_tiling(m, 512)
    if m_pad != m:
        x = jnp.pad(x, ((0, m_pad - m), (0, 0)))

    inputs = [x, w, sc, sh]
    in_specs = [
        pl.BlockSpec((tm, k), lambda i: (i, 0)),
        pl.BlockSpec((k, n_out), lambda i: (0, 0)),
        pl.BlockSpec((1, n_out), lambda i: (0, 0)),
        pl.BlockSpec((1, n_out), lambda i: (0, 0)),
    ]
    has_res = residual is not None
    if has_res:
        r = residual
        if m_pad != m:
            r = jnp.pad(r, ((0, m_pad - m), (0, 0)))
        inputs.append(r)
        in_specs.append(pl.BlockSpec((tm, n_out), lambda i: (i, 0)))

    out = pl.pallas_call(
        functools.partial(_mm_kernel, act=act, has_res=has_res),
        out_shape=jax.ShapeDtypeStruct((m_pad, n_out), jnp.bfloat16),
        grid_spec=pltpu.PrefetchScalarGridSpec(
            num_scalar_prefetch=0,
            grid=(m_pad // tm,),
            in_specs=in_specs,
            out_specs=pl.BlockSpec((tm, n_out), lambda i: (i, 0))),
        compiler_params=pltpu.CompilerParams(
            dimension_semantics=("parallel",),
            vmem_limit_bytes=64 * 1024 * 1024),
    )(*inputs)
    return out[:m] if m_pad != m else out


@functools.partial(jax.jit, static_argnames=("act",))
def conv1x1_bn_act(x, c, *, act, residual=None):
    n, h, w, cin = x.shape
    cout = c["w"].shape[1]
    res2 = None if residual is None else residual.reshape(n * h * w, cout)
    y = _matmul_bn_act(x.reshape(n * h * w, cin), c["w"], c["sc"], c["sh"], res2, act=act)
    return y.reshape(n, h, w, cout)


# ---------------------------------------------------------------------------
# dense kxk conv: per-output-row kernel, k row-blocks as inputs, taps in-kernel
# ---------------------------------------------------------------------------
def _dense_row_kernel(*refs, k, stride, wo, cin, act):
    rows = refs[:k]
    w_ref, sc_ref, sh_ref, o_ref = refs[k:k + 4]
    cout = w_ref.shape[-1]
    acc = jnp.zeros((wo, cout), jnp.float32)
    for di in range(k):
        for dj in range(k):
            if stride == 1:
                seg = rows[di][0, 0, dj:dj + wo, :]
            else:                                         # even/odd lane fold
                q0, par = dj // 2, dj % 2
                seg = rows[di][0, 0, q0:q0 + wo, par * cin:(par + 1) * cin]
            acc = acc + jnp.dot(seg, w_ref[di * k + dj],
                                preferred_element_type=jnp.float32)
    y = acc * sc_ref[...] + sh_ref[...]
    o_ref[...] = _act_f32(y, act).astype(o_ref.dtype)[None, None]


@functools.partial(jax.jit, static_argnames=("k", "stride", "act"))
def conv_kxk_bn_act(x, wtaps, sc, sh, *, k, stride, act):
    n, h, w, cin = x.shape
    assert wtaps.shape[1] == cin
    pad = (k - 1) // 2
    ho = (h + 2 * pad - k) // stride + 1
    wo = (w + 2 * pad - k) // stride + 1
    cout = wtaps.shape[-1]
    xp = jnp.pad(x, ((0, 0), (pad, pad), (pad, pad), (0, 0)))
    hp, wp = h + 2 * pad, w + 2 * pad
    if stride == 2:
        if wp % 2:
            xp = jnp.pad(xp, ((0, 0), (0, 0), (0, 1), (0, 0)))
            wp += 1
        xp = xp.reshape(n, hp, wp // 2, 2 * cin)          # free even/odd lane fold
        row_w, row_c = wp // 2, 2 * cin
    else:
        row_w, row_c = wp, cin

    in_specs = [pl.BlockSpec((1, 1, row_w, row_c),
                             (lambda ni, i, di=di, s=stride: (ni, i * s + di, 0, 0)))
                for di in range(k)]
    in_specs += [
        pl.BlockSpec((k * k, cin, cout), lambda ni, i: (0, 0, 0)),
        pl.BlockSpec((1, cout), lambda ni, i: (0, 0)),
        pl.BlockSpec((1, cout), lambda ni, i: (0, 0)),
    ]
    return pl.pallas_call(
        functools.partial(_dense_row_kernel, k=k, stride=stride, wo=wo, cin=cin, act=act),
        out_shape=jax.ShapeDtypeStruct((n, ho, wo, cout), jnp.bfloat16),
        grid_spec=pltpu.PrefetchScalarGridSpec(
            num_scalar_prefetch=0,
            grid=(n, ho),
            in_specs=in_specs,
            out_specs=pl.BlockSpec((1, 1, wo, cout), lambda ni, i: (ni, i, 0, 0))),
        compiler_params=pltpu.CompilerParams(
            dimension_semantics=("parallel", "parallel")),
    )(*([xp] * k), wtaps, sc, sh)


# ---------------------------------------------------------------------------
# depthwise kxk conv: per-output-row kernel, taps accumulated in-kernel (no patch tensor)
# ---------------------------------------------------------------------------
def _dw_row_kernel(*refs, k, stride, wo, c, act):
    rows = refs[:k]
    w_ref, sc_ref, sh_ref, o_ref = refs[k:k + 4]
    acc = jnp.zeros((wo, c), jnp.float32)
    for di in range(k):
        for dj in range(k):
            if stride == 1:
                seg = rows[di][0, 0, dj:dj + wo, :]
            else:
                q0, par = dj // 2, dj % 2
                seg = rows[di][0, 0, q0:q0 + wo, par * c:(par + 1) * c]
            wt = w_ref[di * k + dj:di * k + dj + 1, :]
            acc = acc + seg.astype(jnp.float32) * wt.astype(jnp.float32)
    y = acc * sc_ref[...] + sh_ref[...]
    o_ref[...] = _act_f32(y, act).astype(o_ref.dtype)[None, None]


@functools.partial(jax.jit, static_argnames=("k", "stride", "act"))
def dwconv_bn_act(x, dw, *, k, stride, act):
    n, h, w, c = x.shape
    pad = (k - 1) // 2
    ho = (h + 2 * pad - k) // stride + 1
    wo = (w + 2 * pad - k) // stride + 1
    xp = jnp.pad(x, ((0, 0), (pad, pad), (pad, pad), (0, 0)))
    hp, wp = h + 2 * pad, w + 2 * pad
    if stride == 2:
        if wp % 2:
            xp = jnp.pad(xp, ((0, 0), (0, 0), (0, 1), (0, 0)))
            wp += 1
        xp = xp.reshape(n, hp, wp // 2, 2 * c)
        row_w, row_c = wp // 2, 2 * c
    else:
        row_w, row_c = wp, c

    in_specs = [pl.BlockSpec((1, 1, row_w, row_c),
                             (lambda ni, i, di=di, s=stride: (ni, i * s + di, 0, 0)))
                for di in range(k)]
    in_specs += [
        pl.BlockSpec((k * k, c), lambda ni, i: (0, 0)),
        pl.BlockSpec((1, c), lambda ni, i: (0, 0)),
        pl.BlockSpec((1, c), lambda ni, i: (0, 0)),
    ]
    return pl.pallas_call(
        functools.partial(_dw_row_kernel, k=k, stride=stride, wo=wo, c=c, act=act),
        out_shape=jax.ShapeDtypeStruct((n, ho, wo, c), jnp.bfloat16),
        grid_spec=pltpu.PrefetchScalarGridSpec(
            num_scalar_prefetch=0,
            grid=(n, ho),
            in_specs=in_specs,
            out_specs=pl.BlockSpec((1, 1, wo, c), lambda ni, i: (ni, i, 0, 0))),
        compiler_params=pltpu.CompilerParams(
            dimension_semantics=("parallel", "parallel")),
    )(*([xp] * k), dw["w"], dw["sc"], dw["sh"])


# ---------------------------------------------------------------------------
# SE: tiled (avgpool + fc1 + relu + fc2 + hsigmoid) gate kernel + lane-dense gate-mul kernel
# ---------------------------------------------------------------------------
def _se_gate_kernel(x_ref, w1_ref, b1_ref, w2_ref, b2_ref, o_ref, acc_ref, *, inv_hw):
    t = pl.program_id(1)

    @pl.when(t == 0)
    def _():
        acc_ref[...] = jnp.zeros_like(acc_ref)

    acc_ref[...] += jnp.sum(x_ref[0].astype(jnp.float32), axis=0, keepdims=True)

    @pl.when(t == pl.num_programs(1) - 1)
    def _():
        pooled = acc_ref[...] * inv_hw
        hdn = jnp.dot(pooled.astype(jnp.bfloat16), w1_ref[...],
                      preferred_element_type=jnp.float32) + b1_ref[...]
        hdn = jnp.maximum(hdn, 0.0)
        gate = jnp.dot(hdn.astype(jnp.bfloat16), w2_ref[...],
                       preferred_element_type=jnp.float32) + b2_ref[...]
        o_ref[...] = (jnp.clip(gate + 3.0, 0.0, 6.0) * (1.0 / 6.0))[None]


def _se_gate(xf, se):
    n, hw, c = xf.shape
    red = se["w1t"].shape[1]
    thw, hw_pad = _m_tiling(hw, 1024)
    if hw_pad != hw:
        xf = jnp.pad(xf, ((0, 0), (0, hw_pad - hw), (0, 0)))     # zeros do not change the sum
    return pl.pallas_call(
        functools.partial(_se_gate_kernel, inv_hw=1.0 / float(hw)),
        out_shape=jax.ShapeDtypeStruct((n, 1, c), jnp.float32),
        grid_spec=pltpu.PrefetchScalarGridSpec(
            num_scalar_prefetch=0,
            grid=(n, hw_pad // thw),
            in_specs=[
                pl.BlockSpec((1, thw, c), lambda b, t: (b, t, 0)),
                pl.BlockSpec((c, red), lambda b, t: (0, 0)),
                pl.BlockSpec((1, red), lambda b, t: (0, 0)),
                pl.BlockSpec((red, c), lambda b, t: (0, 0)),
                pl.BlockSpec((1, c), lambda b, t: (0, 0)),
            ],
            out_specs=pl.BlockSpec((1, 1, c), lambda b, t: (b, 0, 0)),
            scratch_shapes=[pltpu.VMEM((1, c), jnp.float32)]),
        compiler_params=pltpu.CompilerParams(
            dimension_semantics=("parallel", "arbitrary")),
    )(xf, se["w1t"], se["b1"], se["w2t"], se["b2"])


def _se_mul_kernel(x_ref, g_ref, o_ref, *, act):
    y = x_ref[...].astype(jnp.float32) * g_ref[...]
    o_ref[...] = _act_f32(y, act).astype(o_ref.dtype)


@functools.partial(jax.jit, static_argnames=("act",))
def se_apply(x, se, *, act):
    """SELayer gate + multiply (+ optional activation), lane-dense folded when C < 128."""
    n, h, w, c = x.shape
    hw = h * w
    xf = x.reshape(n, hw, c)
    gate = _se_gate(xf, se)                                      # (N, 1, C) f32

    g = 128 // math.gcd(c, 128)                                  # smallest fold making g*C % 128 == 0
    if g > 1 and hw % g == 0:
        xg = xf.reshape(n, hw // g, g * c)
        gg = jnp.tile(gate, (1, 1, g))
    else:
        g = 1
        xg, gg = xf, gate
    rows = hw // g
    tr, rows_pad = _m_tiling(rows, 512)
    if rows_pad != rows:
        xg = jnp.pad(xg, ((0, 0), (0, rows_pad - rows), (0, 0)))

    out = pl.pallas_call(
        functools.partial(_se_mul_kernel, act=act),
        out_shape=jax.ShapeDtypeStruct((n, rows_pad, g * c), jnp.bfloat16),
        grid_spec=pltpu.PrefetchScalarGridSpec(
            num_scalar_prefetch=0,
            grid=(n, rows_pad // tr),
            in_specs=[pl.BlockSpec((1, tr, g * c), lambda b, i: (b, i, 0)),
                      pl.BlockSpec((1, 1, g * c), lambda b, i: (b, 0, 0))],
            out_specs=pl.BlockSpec((1, tr, g * c), lambda b, i: (b, i, 0))),
        compiler_params=pltpu.CompilerParams(
            dimension_semantics=("parallel", "parallel")),
    )(xg, gg)
    return out[:, :rows, :].reshape(n, h, w, c)


# ---------------------------------------------------------------------------
# bilinear 2x upsample (align_corners=False): one tiled kernel per axis
# ---------------------------------------------------------------------------
def _up2x_kernel(x_ref, o_ref):
    x = x_ref[...].astype(jnp.float32)                           # (tr, S, L)
    s = x.shape[1]
    if s > 1:
        # TODO(synk): pltpu.roll(+/-1, axis=1) + iota edge fix would move this to the XLU.
        prev = jnp.concatenate([x[:, :1, :], x[:, :-1, :]], axis=1)
        nxt = jnp.concatenate([x[:, 1:, :], x[:, -1:, :]], axis=1)
    else:
        prev, nxt = x, x
    even = 0.25 * prev + 0.75 * x                                # out[2j]
    odd = 0.75 * x + 0.25 * nxt                                  # out[2j+1]
    o_ref[...] = jnp.concatenate([even, odd], axis=-1).astype(o_ref.dtype)


def _up2x(x3d):
    r, s, l = x3d.shape
    tr = min(64, r)
    while r % tr:
        tr -= 1
    return pl.pallas_call(
        _up2x_kernel,
        out_shape=jax.ShapeDtypeStruct((r, s, 2 * l), jnp.bfloat16),
        grid_spec=pltpu.PrefetchScalarGridSpec(
            num_scalar_prefetch=0,
            grid=(r // tr,),
            in_specs=[pl.BlockSpec((tr, s, l), lambda i: (i, 0, 0))],
            out_specs=pl.BlockSpec((tr, s, 2 * l), lambda i: (i, 0, 0))),
        compiler_params=pltpu.CompilerParams(dimension_semantics=("parallel",)),
    )(x3d)


@jax.jit
def upsample2x(x):
    """nn.Upsample(scale_factor=2, mode='bilinear', align_corners=False), NHWC bf16."""
    n, h, w, c = x.shape
    y = _up2x(x.reshape(n, h, w * c)).reshape(n, 2 * h, w, c)        # interleave rows
    y = _up2x(y.reshape(n * 2 * h, w, c)).reshape(n, 2 * h, 2 * w, c)  # interleave cols
    return y


# ---------------------------------------------------------------------------
# module forward passes
# ---------------------------------------------------------------------------
def inverted_residual_fwd(p, x):
    act = "hswish" if p["use_hs"] else "relu"
    res = x if p["identity"] else None
    if p["short"]:   # dw -> bn -> act -> (SE) -> pw-linear -> bn [+res]
        y = dwconv_bn_act(x, p["dw"], k=p["k"], stride=p["stride"], act=act)
        if p["use_se"]:
            y = se_apply(y, p["se"], act="none")
        y = conv1x1_bn_act(y, p["pwl"], act="none", residual=res)
    else:            # pw -> bn -> act -> dw -> bn -> (SE) -> act -> pw-linear -> bn [+res]
        y = conv1x1_bn_act(x, p["pw"], act=act)
        if p["use_se"]:
            y = dwconv_bn_act(y, p["dw"], k=p["k"], stride=p["stride"], act="none")
            y = se_apply(y, p["se"], act=act)
        else:
            y = dwconv_bn_act(y, p["dw"], k=p["k"], stride=p["stride"], act=act)
        y = conv1x1_bn_act(y, p["pwl"], act="none", residual=res)
    return y


def _apply_layer(layer, x):
    if layer["type"] == "conv_bn":
        y = conv_kxk_bn_act(x, layer["wtaps"], layer["sc"], layer["sh"],
                            k=layer["k"], stride=layer["stride"], act="hswish")
        return y[..., :layer["cout"]]
    return inverted_residual_fwd(layer["p"], x)


def efficientseg_forward(params, x_nchw):
    x = jnp.transpose(x_nchw, (0, 2, 3, 1)).astype(jnp.bfloat16)     # NCHW -> NHWC, bf16
    stem_cin = params["enc_layers"][0]["wtaps"].shape[1]
    if x.shape[-1] != stem_cin:
        x = jnp.pad(x, ((0, 0), (0, 0), (0, 0), (0, stem_cin - x.shape[-1])))

    down_map = params["down_map"]
    concatputs = []
    for idx, layer in enumerate(params["enc_layers"]):
        if idx > 0 and down_map[idx - 1] == 1:
            concatputs.append(x)
        x = _apply_layer(layer, x)
    x = conv1x1_bn_act(x, params["conv"], act="hswish")
    x = conv1x1_bn_act(x, params["conv2"], act="hswish")

    ci = len(concatputs) - 1
    n_dec = len(params["dec_layers"])
    for idx, layer in enumerate(params["dec_layers"]):
        if idx < n_dec - 1:
            if down_map[-1 - idx] == 1:
                x = upsample2x(x)
            if down_map[-idx] == 1:      # matches PyTorch: down_map[-0] == down_map[0]
                x = jnp.concatenate([x, concatputs[ci]], axis=-1)
                ci -= 1
        if idx == n_dec - 1:
            x = upsample2x(x)
        x = _apply_layer(layer, x)
    return jnp.transpose(x, (0, 3, 1, 2)).astype(jnp.float32)        # NHWC -> NCHW


# ---------------------------------------------------------------------------
# deterministic parameter construction (mirrors EfficientSeg.__init__) — all weights are
# pre-transformed / pre-cast / pre-padded ONCE here (nothing re-padded per forward call).
# ---------------------------------------------------------------------------
def _make_divisible(v, divisor, min_value=None):
    if min_value is None:
        min_value = divisor
    new_v = max(min_value, int(v + divisor / 2) // divisor * divisor)
    if new_v < 0.9 * v:
        new_v += divisor
    return new_v


class _KeyGen:
    def __init__(self, seed):
        self._key = jax.random.PRNGKey(seed)

    def __call__(self):
        self._key, sub = jax.random.split(self._key)
        return sub


def _prep_bn(kg, c):
    gamma = 1.0 + 0.1 * jax.random.normal(kg(), (c,), jnp.float32)
    beta = 0.1 * jax.random.normal(kg(), (c,), jnp.float32)
    mean = 0.1 * jax.random.normal(kg(), (c,), jnp.float32)
    var = jax.random.uniform(kg(), (c,), jnp.float32, 0.5, 1.5)
    scale = gamma / jnp.sqrt(var + 1e-5)          # eval-mode BN folded
    shift = beta - mean * scale
    return scale.reshape(1, c), shift.reshape(1, c)


def _prep_conv1x1(kg, cin, cout):
    w = 0.1 * jax.random.normal(kg(), (cout, cin, 1, 1), jnp.float32)
    sc, sh = _prep_bn(kg, cout)
    return dict(w=jnp.transpose(w[:, :, 0, 0]).astype(jnp.bfloat16), sc=sc, sh=sh)


def _prep_dense_conv(kg, cout, cin, k, stride, cin_pad=None, cout_pad=None):
    w = 0.1 * jax.random.normal(kg(), (cout, cin, k, k), jnp.float32)
    sc, sh = _prep_bn(kg, cout)
    cin_pad = cin_pad or cin
    cout_pad = cout_pad or cout
    wtaps = jnp.transpose(w, (2, 3, 1, 0)).reshape(k * k, cin, cout)
    wtaps = jnp.pad(wtaps, ((0, 0), (0, cin_pad - cin), (0, cout_pad - cout)))
    sc = jnp.pad(sc, ((0, 0), (0, cout_pad - cout)))
    sh = jnp.pad(sh, ((0, 0), (0, cout_pad - cout)))
    return dict(type="conv_bn", wtaps=wtaps.astype(jnp.bfloat16), sc=sc, sh=sh,
                k=k, stride=stride, cout=cout)


def _prep_ir(kg, inp, hidden, oup, k, stride, use_se, use_hs):
    p = dict(k=k, stride=stride, use_se=bool(use_se), use_hs=bool(use_hs),
             short=(inp == hidden), identity=(stride == 1 and inp == oup))
    if not p["short"]:
        p["pw"] = _prep_conv1x1(kg, inp, hidden)
    wdw = 0.1 * jax.random.normal(kg(), (hidden, 1, k, k), jnp.float32)
    dsc, dsh = _prep_bn(kg, hidden)
    p["dw"] = dict(
        w=jnp.transpose(wdw[:, 0], (1, 2, 0)).reshape(k * k, hidden).astype(jnp.bfloat16),
        sc=dsc, sh=dsh)
    if p["use_se"]:
        red = _make_divisible(hidden // 4, 8)
        w1 = 0.1 * jax.random.normal(kg(), (red, hidden), jnp.float32)
        b1 = 0.1 * jax.random.normal(kg(), (red,), jnp.float32)
        w2 = 0.1 * jax.random.normal(kg(), (hidden, red), jnp.float32)
        b2 = 0.1 * jax.random.normal(kg(), (hidden,), jnp.float32)
        p["se"] = dict(w1t=w1.T.astype(jnp.bfloat16), b1=b1.reshape(1, red),
                       w2t=w2.T.astype(jnp.bfloat16), b2=b2.reshape(1, hidden))
    p["pwl"] = _prep_conv1x1(kg, hidden, oup)
    return dict(type="ir", p=p)


ENC_CONFIG = [[3, 1, 16, 0, 0, 1], [3, 4, 24, 0, 0, 2], [3, 3, 24, 0, 0, 1],
              [5, 3, 40, 1, 0, 2], [5, 3, 40, 1, 0, 1], [5, 3, 40, 1, 0, 1],
              [3, 6, 80, 0, 1, 2], [3, 2.5, 80, 0, 1, 1], [3, 2.3, 80, 0, 1, 1],
              [3, 2.3, 80, 0, 1, 1], [3, 6, 112, 1, 1, 1], [3, 6, 112, 1, 1, 1],
              [5, 6, 160, 1, 1, 2], [5, 6, 160, 1, 1, 1], [5, 6, 160, 1, 1, 1]]


def build_efficientseg_params(seed, num_classes, width_coeff):
    kg = _KeyGen(seed)
    input_channel = _make_divisible(16 * width_coeff, 8)
    enc_layers = [_prep_dense_conv(kg, input_channel, 3, 3, stride=2, cin_pad=8)]
    dec_layers = [_prep_dense_conv(kg, num_classes, input_channel, 3, stride=1,
                                   cout_pad=_round_up(num_classes, 128))]
    down_map = []
    exp_size = None
    for idx, (k, t, c, use_se, use_hs, s) in enumerate(ENC_CONFIG):
        output_channel = _make_divisible(c * width_coeff, 8)
        exp_size = _make_divisible(input_channel * t, 8)
        enc_layers.append(_prep_ir(kg, input_channel, exp_size, output_channel,
                                   k, s, use_se, use_hs))
        if idx < len(ENC_CONFIG) - 1 and ENC_CONFIG[idx + 1][-1] == 2:
            dec_in = output_channel * 2
        else:
            dec_in = output_channel
        dec_layers.insert(0, _prep_ir(kg, dec_in, exp_size, input_channel,
                                      k, 1, use_se, use_hs))
        input_channel = output_channel
        down_map.append(1 if s == 2 else 0)
    conv = _prep_conv1x1(kg, input_channel, exp_size)
    conv2 = _prep_conv1x1(kg, exp_size, input_channel)
    return dict(enc_layers=enc_layers, dec_layers=dec_layers, down_map=down_map,
                conv=conv, conv2=conv2)


# ---------------------------------------------------------------------------
if __name__ == "__main__":
    num_classes = 4
    width_coeff = 1.0
    params = build_efficientseg_params(seed=0, num_classes=num_classes,
                                       width_coeff=width_coeff)
    key = jax.random.PRNGKey(0)
    x = jax.random.normal(key, (2, 3, 32, 32), jnp.float32)   # NCHW, like PyTorch
    out = efficientseg_forward(params, x)
    out = jax.block_until_ready(out)
    assert out.shape == (2, num_classes, 32, 32), out.shape
    assert bool(jnp.all(jnp.isfinite(out)))
    print("KERNEL_OK")
</pallas_src>

<mosaic_0001>
module attributes {stable_mosaic.version = 11 : i64} {
  func.func @_dense_row_kernel(%arg0: i32, %arg1: i32, %arg2: memref<1x1x17x16xbf16, #tpu.memory_space<vmem>>, %arg3: memref<1x1x17x16xbf16, #tpu.memory_space<vmem>>, %arg4: memref<1x1x17x16xbf16, #tpu.memory_space<vmem>>, %arg5: memref<9x8x16xbf16, #tpu.memory_space<vmem>>, %arg6: memref<1x16xf32, #tpu.memory_space<vmem>>, %arg7: memref<1x16xf32, #tpu.memory_space<vmem>>, %arg8: memref<1x1x16x16xbf16, #tpu.memory_space<vmem>>) attributes {dimension_semantics = [#tpu.dimension_semantics<parallel>, #tpu.dimension_semantics<parallel>], iteration_bounds = array<i64: 2, 16>, scalar_prefetch = 0 : i64, scratch_operands = 0 : i64, tpu.core_type = #tpu.core_type<tc>, window_params = [{transform_indices = @transform_0, window_bounds = array<i64: 1, 1, 17, 16>}, {transform_indices = @transform_1, window_bounds = array<i64: 1, 1, 17, 16>}, {transform_indices = @transform_2, window_bounds = array<i64: 1, 1, 17, 16>}, {pipeline_mode = #tpu.pipeline_mode<synchronous>, transform_indices = @transform_3, window_bounds = array<i64: 9, 8, 16>}, {pipeline_mode = #tpu.pipeline_mode<synchronous>, transform_indices = @transform_4, window_bounds = array<i64: 1, 16>}, {pipeline_mode = #tpu.pipeline_mode<synchronous>, transform_indices = @transform_5, window_bounds = array<i64: 1, 16>}, {transform_indices = @transform_6, window_bounds = array<i64: 1, 1, 16, 16>}]} {
    %cst = arith.constant 0.000000e+00 : f32
    %0 = vector.broadcast %cst : f32 to vector<16x16xf32>
    %c0 = arith.constant 0 : index
    %c0_0 = arith.constant 0 : index
    %c0_1 = arith.constant 0 : index
    %c0_2 = arith.constant 0 : index
    %1 = vector.load %arg2[%c0, %c0_0, %c0_1, %c0_2] : memref<1x1x17x16xbf16, #tpu.memory_space<vmem>>, vector<1x1x16x8xbf16>
    %2 = vector.shape_cast %1 : vector<1x1x16x8xbf16> to vector<16x8xbf16>
    %c0_3 = arith.constant 0 : index
    %c0_4 = arith.constant 0 : index
    %c0_5 = arith.constant 0 : index
    %3 = vector.load %arg5[%c0_3, %c0_4, %c0_5] : memref<9x8x16xbf16, #tpu.memory_space<vmem>>, vector<1x8x16xbf16>
    %4 = vector.shape_cast %3 : vector<1x8x16xbf16> to vector<8x16xbf16>
    %cst_6 = arith.constant dense<0.000000e+00> : vector<16x16xf32>
    %5 = tpu.matmul %2, %4, %cst_6 {dimension_numbers = #tpu.dot_dimension_numbers<[1], [0], [0], [1], [0, 0, 1, 1], [], []>} : vector<16x8xbf16>, vector<8x16xbf16>, vector<16x16xf32> -> vector<16x16xf32>
    %6 = arith.addf %0, %5 : vector<16x16xf32>
    %c0_7 = arith.constant 0 : index
    %c0_8 = arith.constant 0 : index
    %c0_9 = arith.constant 0 : index
    %c8 = arith.constant 8 : index
    %7 = vector.load %arg2[%c0_7, %c0_8, %c0_9, %c8] : memref<1x1x17x16xbf16, #tpu.memory_space<vmem>>, vector<1x1x16x8xbf16>
    %8 = vector.shape_cast %7 : vector<1x1x16x8xbf16> to vector<16x8xbf16>
    %c1 = arith.constant 1 : index
    %c0_10 = arith.constant 0 : index
    %c0_11 = arith.constant 0 : index
    %9 = vector.load %arg5[%c1, %c0_10, %c0_11] : memref<9x8x16xbf16, #tpu.memory_space<vmem>>, vector<1x8x16xbf16>
    %10 = vector.shape_cast %9 : vector<1x8x16xbf16> to vector<8x16xbf16>
    %cst_12 = arith.constant dense<0.000000e+00> : vector<16x16xf32>
    %11 = tpu.matmul %8, %10, %cst_12 {dimension_numbers = #tpu.dot_dimension_numbers<[1], [0], [0], [1], [0, 0, 1, 1], [], []>} : vector<16x8xbf16>, vector<8x16xbf16>, vector<16x16xf32> -> vector<16x16xf32>
    %12 = arith.addf %6, %11 : vector<16x16xf32>
    %c0_13 = arith.constant 0 : index
    %c0_14 = arith.constant 0 : index
    %c1_15 = arith.constant 1 : index
    %c0_16 = arith.constant 0 : index
    %13 = vector.load %arg2[%c0_13, %c0_14, %c1_15, %c0_16] : memref<1x1x17x16xbf16, #tpu.memory_space<vmem>>, vector<1x1x16x8xbf16>
    %14 = vector.shape_cast %13 : vector<1x1x16x8xbf16> to vector<16x8xbf16>
    %c2 = arith.constant 2 : index
    %c0_17 = arith.constant 0 : index
    %c0_18 = arith.constant 0 : index
    %15 = vector.load %arg5[%c2, %c0_17, %c0_18] : memref<9x8x16xbf16, #tpu.memory_space<vmem>>, vector<1x8x16xbf16>
    %16 = vector.shape_cast %15 : vector<1x8x16xbf16> to vector<8x16xbf16>
    %cst_19 = arith.constant dense<0.000000e+00> : vector<16x16xf32>
    %17 = tpu.matmul %14, %16, %cst_19 {dimension_numbers = #tpu.dot_dimension_numbers<[1], [0], [0], [1], [0, 0, 1, 1], [], []>} : vector<16x8xbf16>, vector<8x16xbf16>, vector<16x16xf32> -> vector<16x16xf32>
    %18 = arith.addf %12, %17 : vector<16x16xf32>
    %c0_20 = arith.constant 0 : index
    %c0_21 = arith.constant 0 : index
    %c0_22 = arith.constant 0 : index
    %c0_23 = arith.constant 0 : index
    %19 = vector.load %arg3[%c0_20, %c0_21, %c0_22, %c0_23] : memref<1x1x17x16xbf16, #tpu.memory_space<vmem>>, vector<1x1x16x8xbf16>
    %20 = vector.shape_cast %19 : vector<1x1x16x8xbf16> to vector<16x8xbf16>
    %c3 = arith.constant 3 : index
    %c0_24 = arith.constant 0 : index
    %c0_25 = arith.constant 0 : index
    %21 = vector.load %arg5[%c3, %c0_24, %c0_25] : memref<9x8x16xbf16, #tpu.memory_space<vmem>>, vector<1x8x16xbf16>
    %22 = vector.shape_cast %21 : vector<1x8x16xbf16> to vector<8x16xbf16>
    %cst_26 = arith.constant dense<0.000000e+00> : vector<16x16xf32>
    %23 = tpu.matmul %20, %22, %cst_26 {dimension_numbers = #tpu.dot_dimension_numbers<[1], [0], [0], [1], [0, 0, 1, 1], [], []>} : vector<16x8xbf16>, vector<8x16xbf16>, vector<16x16xf32> -> vector<16x16xf32>
    %24 = arith.addf %18, %23 : vector<16x16xf32>
    %c0_27 = arith.constant 0 : index
    %c0_28 = arith.constant 0 : index
    %c0_29 = arith.constant 0 : index
    %c8_30 = arith.constant 8 : index
    %25 = vector.load %arg3[%c0_27, %c0_28, %c0_29, %c8_30] : memref<1x1x17x16xbf16, #tpu.memory_space<vmem>>, vector<1x1x16x8xbf16>
    %26 = vector.shape_cast %25 : vector<1x1x16x8xbf16> to vector<16x8xbf16>
    %c4 = arith.constant 4 : index
    %c0_31 = arith.constant 0 : index
    %c0_32 = arith.constant 0 : index
    %27 = vector.load %arg5[%c4, %c0_31, %c0_32] : memref<9x8x16xbf16, #tpu.memory_space<vmem>>, vector<1x8x16xbf16>
    %28 = vector.shape_cast %27 : vector<1x8x16xbf16> to vector<8x16xbf16>
    %cst_33 = arith.constant dense<0.000000e+00> : vector<16x16xf32>
    %29 = tpu.matmul %26, %28, %cst_33 {dimension_numbers = #tpu.dot_dimension_numbers<[1], [0], [0], [1], [0, 0, 1, 1], [], []>} : vector<16x8xbf16>, vector<8x16xbf16>, vector<16x16xf32> -> vector<16x16xf32>
    %30 = arith.addf %24, %29 : vector<16x16xf32>
    %c0_34 = arith.constant 0 : index
    %c0_35 = arith.constant 0 : index
    %c1_36 = arith.constant 1 : index
    %c0_37 = arith.constant 0 : index
    %31 = vector.load %arg3[%c0_34, %c0_35, %c1_36, %c0_37] : memref<1x1x17x16xbf16, #tpu.memory_space<vmem>>, vector<1x1x16x8xbf16>
    %32 = vector.shape_cast %31 : vector<1x1x16x8xbf16> to vector<16x8xbf16>
    %c5 = arith.constant 5 : index
    %c0_38 = arith.constant 0 : index
    %c0_39 = arith.constant 0 : index
    %33 = vector.load %arg5[%c5, %c0_38, %c0_39] : memref<9x8x16xbf16, #tpu.memory_space<vmem>>, vector<1x8x16xbf16>
    %34 = vector.shape_cast %33 : vector<1x8x16xbf16> to vector<8x16xbf16>
    %cst_40 = arith.constant dense<0.000000e+00> : vector<16x16xf32>
    %35 = tpu.matmul %32, %34, %cst_40 {dimension_numbers = #tpu.dot_dimension_numbers<[1], [0], [0], [1], [0, 0, 1, 1], [], []>} : vector<16x8xbf16>, vector<8x16xbf16>, vector<16x16xf32> -> vector<16x16xf32>
    %36 = arith.addf %30, %35 : vector<16x16xf32>
    %c0_41 = arith.constant 0 : index
    %c0_42 = arith.constant 0 : index
    %c0_43 = arith.constant 0 : index
    %c0_44 = arith.constant 0 : index
    %37 = vector.load %arg4[%c0_41, %c0_42, %c0_43, %c0_44] : memref<1x1x17x16xbf16, #tpu.memory_space<vmem>>, vector<1x1x16x8xbf16>
    %38 = vector.shape_cast %37 : vector<1x1x16x8xbf16> to vector<16x8xbf16>
    %c6 = arith.constant 6 : index
    %c0_45 = arith.constant 0 : index
    %c0_46 = arith.constant 0 : index
    %39 = vector.load %arg5[%c6, %c0_45, %c0_46] : memref<9x8x16xbf16, #tpu.memory_space<vmem>>, vector<1x8x16xbf16>
    %40 = vector.shape_cast %39 : vector<1x8x16xbf16> to vector<8x16xbf16>
    %cst_47 = arith.constant dense<0.000000e+00> : vector<16x16xf32>
    %41 = tpu.matmul %38, %40, %cst_47 {dimension_numbers = #tpu.dot_dimension_numbers<[1], [0], [0], [1], [0, 0, 1, 1], [], []>} : vector<16x8xbf16>, vector<8x16xbf16>, vector<16x16xf32> -> vector<16x16xf32>
    %42 = arith.addf %36, %41 : vector<16x16xf32>
    %c0_48 = arith.constant 0 : index
    %c0_49 = arith.constant 0 : index
    %c0_50 = arith.constant 0 : index
    %c8_51 = arith.constant 8 : index
    %43 = vector.load %arg4[%c0_48, %c0_49, %c0_50, %c8_51] : memref<1x1x17x16xbf16, #tpu.memory_space<vmem>>, vector<1x1x16x8xbf16>
    %44 = vector.shape_cast %43 : vector<1x1x16x8xbf16> to vector<16x8xbf16>
    %c7 = arith.constant 7 : index
    %c0_52 = arith.constant 0 : index
    %c0_53 = arith.constant 0 : index
    %45 = vector.load %arg5[%c7, %c0_52, %c0_53] : memref<9x8x16xbf16, #tpu.memory_space<vmem>>, vector<1x8x16xbf16>
    %46 = vector.shape_cast %45 : vector<1x8x16xbf16> to vector<8x16xbf16>
    %cst_54 = arith.constant dense<0.000000e+00> : vector<16x16xf32>
    %47 = tpu.matmul %44, %46, %cst_54 {dimension_numbers = #tpu.dot_dimension_numbers<[1], [0], [0], [1], [0, 0, 1, 1], [], []>} : vector<16x8xbf16>, vector<8x16xbf16>, vector<16x16xf32> -> vector<16x16xf32>
    %48 = arith.addf %42, %47 : vector<16x16xf32>
    %c0_55 = arith.constant 0 : index
    %c0_56 = arith.constant 0 : index
    %c1_57 = arith.constant 1 : index
    %c0_58 = arith.constant 0 : index
    %49 = vector.load %arg4[%c0_55, %c0_56, %c1_57, %c0_58] : memref<1x1x17x16xbf16, #tpu.memory_space<vmem>>, vector<1x1x16x8xbf16>
    %50 = vector.shape_cast %49 : vector<1x1x16x8xbf16> to vector<16x8xbf16>
    %c8_59 = arith.constant 8 : index
    %c0_60 = arith.constant 0 : index
    %c0_61 = arith.constant 0 : index
    %51 = vector.load %arg5[%c8_59, %c0_60, %c0_61] : memref<9x8x16xbf16, #tpu.memory_space<vmem>>, vector<1x8x16xbf16>
    %52 = vector.shape_cast %51 : vector<1x8x16xbf16> to vector<8x16xbf16>
    %cst_62 = arith.constant dense<0.000000e+00> : vector<16x16xf32>
    %53 = tpu.matmul %50, %52, %cst_62 {dimension_numbers = #tpu.dot_dimension_numbers<[1], [0], [0], [1], [0, 0, 1, 1], [], []>} : vector<16x8xbf16>, vector<8x16xbf16>, vector<16x16xf32> -> vector<16x16xf32>
    %54 = arith.addf %48, %53 : vector<16x16xf32>
    %c0_63 = arith.constant 0 : index
    %c0_64 = arith.constant 0 : index
    %55 = vector.load %arg6[%c0_63, %c0_64] : memref<1x16xf32, #tpu.memory_space<vmem>>, vector<1x16xf32>
    %56 = vector.broadcast %55 : vector<1x16xf32> to vector<16x16xf32>
    %57 = arith.mulf %54, %56 : vector<16x16xf32>
    %c0_65 = arith.constant 0 : index
    %c0_66 = arith.constant 0 : index
    %58 = vector.load %arg7[%c0_65, %c0_66] : memref<1x16xf32, #tpu.memory_space<vmem>>, vector<1x16xf32>
    %59 = vector.broadcast %58 : vector<1x16xf32> to vector<16x16xf32>
    %60 = arith.addf %57, %59 : vector<16x16xf32>
    %cst_67 = arith.constant 3.000000e+00 : f32
    %61 = vector.broadcast %cst_67 : f32 to vector<16x16xf32>
    %62 = arith.addf %60, %61 : vector<16x16xf32>
    %cst_68 = arith.constant 0.000000e+00 : f32
    %cst_69 = arith.constant 6.000000e+00 : f32
    %63 = vector.broadcast %cst_68 : f32 to vector<16x16xf32>
    %64 = arith.maximumf %63, %62 : vector<16x16xf32>
    %65 = vector.broadcast %cst_69 : f32 to vector<16x16xf32>
    %66 = arith.minimumf %65, %64 : vector<16x16xf32>
    %cst_70 = arith.constant 0.166666672 : f32
    %67 = vector.broadcast %cst_70 : f32 to vector<16x16xf32>
    %68 = arith.mulf %66, %67 : vector<16x16xf32>
    %69 = arith.mulf %60, %68 : vector<16x16xf32>
    %70 = arith.truncf %69 : vector<16x16xf32> to vector<16x16xbf16>
    %71 = vector.shape_cast %70 : vector<16x16xbf16> to vector<1x1x16x16xbf16>
    %c0_71 = arith.constant 0 : index
    %c0_72 = arith.constant 0 : index
    %c0_73 = arith.constant 0 : index
    %c0_74 = arith.constant 0 : index
    %72 = vector.load %arg8[%c0_71, %c0_72, %c0_73, %c0_74] : memref<1x1x16x16xbf16, #tpu.memory_space<vmem>>, vector<1x1x16x16xbf16>
    tpu.vector_store %arg8[%c0_71, %c0_72, %c0_73, %c0_74], %71 {strides = array<i32>} : memref<1x1x16x16xbf16, #tpu.memory_space<vmem>>, vector<1x1x16x16xbf16>,
    return
  }
  func.func @transform_0(%arg0: i32, %arg1: i32) -> (i32, i32, i32, i32) {
    %c2_i32 = arith.constant 2 : i32
    %0 = arith.muli %arg1, %c2_i32 : i32
    %c0_i32 = arith.constant 0 : i32
    %1 = arith.addi %0, %c0_i32 : i32
    %c0_i32_0 = arith.constant 0 : i32
    %c0_i32_1 = arith.constant 0 : i32
    %c0_i32_2 = arith.constant 0 : i32
    return %arg0, %1, %c0_i32_0, %c0_i32_1 : i32, i32, i32, i32
  }
  func.func @transform_1(%arg0: i32, %arg1: i32) -> (i32, i32, i32, i32) {
    %c2_i32 = arith.constant 2 : i32
    %0 = arith.muli %arg1, %c2_i32 : i32
    %c1_i32 = arith.constant 1 : i32
    %1 = arith.addi %0, %c1_i32 : i32
    %c0_i32 = arith.constant 0 : i32
    %c0_i32_0 = arith.constant 0 : i32
    %c0_i32_1 = arith.constant 0 : i32
    return %arg0, %1, %c0_i32, %c0_i32_0 : i32, i32, i32, i32
  }
  func.func @transform_2(%arg0: i32, %arg1: i32) -> (i32, i32, i32, i32) {
    %c2_i32 = arith.constant 2 : i32
    %0 = arith.muli %arg1, %c2_i32 : i32
    %c2_i32_0 = arith.constant 2 : i32
    %1 = arith.addi %0, %c2_i32_0 : i32
    %c0_i32 = arith.constant 0 : i32
    %c0_i32_1 = arith.constant 0 : i32
    %c0_i32_2 = arith.constant 0 : i32
    return %arg0, %1, %c0_i32, %c0_i32_1 : i32, i32, i32, i32
  }
  func.func @transform_3(%arg0: i32, %arg1: i32) -> (i32, i32, i32) {
    %c0_i32 = arith.constant 0 : i32
    %c0_i32_0 = arith.constant 0 : i32
    %c0_i32_1 = arith.constant 0 : i32
    %c0_i32_2 = arith.constant 0 : i32
    return %c0_i32, %c0_i32_0, %c0_i32_1 : i32, i32, i32
  }
  func.func @transform_4(%arg0: i32, %arg1: i32) -> (i32, i32) {
    %c0_i32 = arith.constant 0 : i32
    %c0_i32_0 = arith.constant 0 : i32
    %c0_i32_1 = arith.constant 0 : i32
    return %c0_i32, %c0_i32_0 : i32, i32
  }
  func.func @transform_5(%arg0: i32, %arg1: i32) -> (i32, i32) {
    %c0_i32 = arith.constant 0 : i32
    %c0_i32_0 = arith.constant 0 : i32
    %c0_i32_1 = arith.constant 0 : i32
    return %c0_i32, %c0_i32_0 : i32, i32
  }
  func.func @transform_6(%arg0: i32, %arg1: i32) -> (i32, i32, i32, i32) {
    %c0_i32 = arith.constant 0 : i32
    %c0_i32_0 = arith.constant 0 : i32
    %c0_i32_1 = arith.constant 0 : i32
    return %arg0, %arg1, %c0_i32, %c0_i32_0 : i32, i32, i32, i32
  }
}

</mosaic_0001>

<llo_original>
// kernel: conv_kxk_bn_act.1
$region0: #{conv_kxk_bn_act.1}
  #allocation0 [shape = 'u32[]', space=smem, size = 0x4, offset = 0x4, fixed_abs, tag = 'smem constant byte address 0x4 - core index']
  #allocation1 [shape = 'u32[144,128]{1,0:T(1,128)}', space=vmem, size = 0x12000, scoped, tag = 'internal scratch']
  %s0 = inlined_call_operand.vmem [shape: bf16[2,34,17,16], index: 0, kind: input, shape index: {}, may-alias: {0,1,2}]
  %s1 = inlined_call_operand.vmem [shape: bf16[2,34,17,16], index: 1, kind: input, shape index: {}, may-alias: {0,1,2}]
  %s2 = inlined_call_operand.vmem [shape: bf16[2,34,17,16], index: 2, kind: input, shape index: {}, may-alias: {0,1,2}]
  %s3 = inlined_call_operand.vmem [shape: bf16[9,8,16], index: 3, kind: input, shape index: {}]
  %s4 = inlined_call_operand.vmem [shape: f32[1,16], index: 4, kind: input, shape index: {}]
  %s5 = inlined_call_operand.vmem [shape: f32[1,16], index: 5, kind: input, shape index: {}]
  %s6 = inlined_call_operand.hbm [shape: bf16[2,16,16,16], index: 6, kind: output, shape index: {}]
  %s7 = sld [smem:[#allocation0]]
  $region57: #{conv_kxk_bn_act.1} parent=0
    _
  %s9 = ssub.s32 1, %s7
  %s10 = scalar_select 0, %s9, %s7
  $region1: #{conv_kxk_bn_act.1} parent=0
    #allocation2 [shape = 'u8[8192]{0}', space=vmem, size = 0x2000, scoped, tag = 'output window, operand 0']
    #allocation3 [shape = 's32[2]{0}', space=sflag, size = 0x8, scoped, tag = 'scoped memory for conv_kxk_bn_act.1']
    %11 = vsyncpa [#allocation3], 0
    %s12 = scalar_lea.sflag [#allocation3], 1
    %13 = vsyncpa %s12, 0
    loop: start=0, step=1, limit=34
    $region2: #{conv_kxk_bn_act.1} parent=1 // loop_pre_header
      _
    $region3: #{conv_kxk_bn_act.1} parent=1 // loop_header
      %s15 = sphi 0, %s19
      %p16 = scmp.ge.s32.totalorder %s15, 34
      %s22 = sphi 0, %s34
      %s23 = sphi 0, %s30
      %s24 = sphi 0, %s22
      %s25 = sphi 0, %s23
      %s26 = sphi 0, %s24
      %s27 = sphi 0, %s25
      %s41 = sphi 0, %s43
      %s44 = sphi 0, %s41
      %s45 = sphi 0, %s44
      %s61 = sphi 0, %s45
      %s73 = sphi 0, %s75
      %s76 = sphi 0, %s73
      %s77 = sphi 0, %s76
      %s93 = sphi 0, %s77
      %s105 = sphi 0, %s107
      %s108 = sphi 0, %s105
      %s109 = sphi 0, %s108
      %s125 = sphi 0, %s109
      %s129 = sphi 0, %s129
      %s131 = sphi 0, %s129
      %s132 = sphi 0, %s131
      %s146 = sphi 0, %s132
      %s150 = sphi 0, %s150
      %s152 = sphi 0, %s150
      %s153 = sphi 0, %s152
      %s167 = sphi 0, %s153
      %s171 = sphi 0, %s171
      %s173 = sphi 0, %s171
      %s174 = sphi 0, %s173
      %s188 = sphi 0, %s174
      %s196 = sphi 0, %s198
      %s199 = sphi 0, %s196
      %s200 = sphi 0, %s199
      %s216 = sphi 0, %s200
    $region4: #{conv_kxk_bn_act.1} parent=1 // loop_header_branch
      %18 = sbr.rel (%p16) target = $region8
    $region5: #{conv_kxk_bn_act.1} parent=1 // loop_body
      %s20 = ssub.s32 %s15, 1
      %s21 = ssub.s32 %s15, 2
      %s28 = sadd.s32 1, %s23
      %p29 = scmp.ge.s32.totalorder %s28, 16
      %s30 = scalar_select %p29, 0, %s28
      %s31 = sadd.s32 1, %s22
      %s32 = scalar_select %p29, %s31, %s22
      %p33 = scmp.ge.s32.totalorder %s32, 2
      %s34 = scalar_select %p33, 0, %s32
      %s35 = smul.u32 %s23, 2
      %s36 = smul.u32 %s30, 2
      %s37 = ssub.s32 %s22, %s34
      %s38 = ssub.s32 %s35, %s36
      %s39 = sor.u32 %s37, %s38
      %p40 = scmp.eq.s32.totalorder %s39, 0
      %s42 = sadd.s32 %s41, 1
      %s43 = scalar_select %p40, %s41, %s42
      %p46 = pneg %p40
      %p47 = scmp.eq.s32.totalorder %s15, 31
      %p48 = por %p46, %p47
      %p49 = scmp.ne.s32.totalorder %s41, %s44
      %p50 = scmp.eq.s32.totalorder %s15, 0
      %p51 = por %p49, %p50
      %p52 = scmp.ne.s32.totalorder %s41, %s44
      %p53 = scmp.eq.s32.totalorder %s20, 31
      %p54 = por %p52, %p53
      %p55 = scmp.ne.s32.totalorder %s44, %s45
      %p56 = scmp.eq.s32.totalorder %s20, 0
      %p57 = por %p55, %p56
      %p58 = scmp.ne.s32.totalorder %s44, %s45
      %p59 = scmp.eq.s32.totalorder %s21, 31
      %p60 = por %p58, %p59
      %p62 = scmp.ne.s32.totalorder %s45, %s61
      %p63 = scmp.eq.s32.totalorder %s21, 0
      %p64 = por %p62, %p63
      %s65 = smul.u32 %s23, 2
      %s66 = sadd.s32 %s65, 1
      %s67 = smul.u32 %s30, 2
      %s68 = sadd.s32 %s67, 1
      %s69 = ssub.s32 %s22, %s34
      %s70 = ssub.s32 %s66, %s68
      %s71 = sor.u32 %s69, %s70
      %p72 = scmp.eq.s32.totalorder %s71, 0
      %s74 = sadd.s32 %s73, 1
      %s75 = scalar_select %p72, %s73, %s74
      %p78 = pneg %p72
      %p79 = scmp.eq.s32.totalorder %s15, 31
      %p80 = por %p78, %p79
      %p81 = scmp.ne.s32.totalorder %s73, %s76
      %p82 = scmp.eq.s32.totalorder %s15, 0
      %p83 = por %p81, %p82
      %p84 = scmp.ne.s32.totalorder %s73, %s76
      %p85 = scmp.eq.s32.totalorder %s20, 31
      %p86 = por %p84, %p85
      %p87 = scmp.ne.s32.totalorder %s76, %s77
      %p88 = scmp.eq.s32.totalorder %s20, 0
      %p89 = por %p87, %p88
      %p90 = scmp.ne.s32.totalorder %s76, %s77
      %p91 = scmp.eq.s32.totalorder %s21, 31
      %p92 = por %p90, %p91
      %p94 = scmp.ne.s32.totalorder %s77, %s93
      %p95 = scmp.eq.s32.totalorder %s21, 0
      %p96 = por %p94, %p95
      %s97 = smul.u32 %s23, 2
      %s98 = sadd.s32 %s97, 2
      %s99 = smul.u32 %s30, 2
      %s100 = sadd.s32 %s99, 2
      %s101 = ssub.s32 %s22, %s34
      %s102 = ssub.s32 %s98, %s100
      %s103 = sor.u32 %s101, %s102
      %p104 = scmp.eq.s32.totalorder %s103, 0
      %s106 = sadd.s32 %s105, 1
      %s107 = scalar_select %p104, %s105, %s106
      %p110 = pneg %p104
      %p111 = scmp.eq.s32.totalorder %s15, 31
      %p112 = por %p110, %p111
      %p113 = scmp.ne.s32.totalorder %s105, %s108
      %p114 = scmp.eq.s32.totalorder %s15, 0
      %p115 = por %p113, %p114
      %p116 = scmp.ne.s32.totalorder %s105, %s108
      %p117 = scmp.eq.s32.totalorder %s20, 31
      %p118 = por %p116, %p117
      %p119 = scmp.ne.s32.totalorder %s108, %s109
      %p120 = scmp.eq.s32.totalorder %s20, 0
      %p121 = por %p119, %p120
      %p122 = scmp.ne.s32.totalorder %s108, %s109
      %p123 = scmp.eq.s32.totalorder %s21, 31
      %p124 = por %p122, %p123
      %p126 = scmp.ne.s32.totalorder %s109, %s125
      %p127 = scmp.eq.s32.totalorder %s21, 0
      %p128 = por %p126, %p127
      %s130 = sadd.s32 %s129, 1
      %p133 = scmp.eq.s32.totalorder %s15, 31
      %p134 = scmp.ne.s32.totalorder %s129, %s131
      %p135 = scmp.eq.s32.totalorder %s15, 0
      %p136 = por %p134, %p135
      %p137 = scmp.ne.s32.totalorder %s129, %s131
      %p138 = scmp.eq.s32.totalorder %s20, 31
      %p139 = por %p137, %p138
      %p140 = scmp.ne.s32.totalorder %s131, %s132
      %p141 = scmp.eq.s32.totalorder %s20, 0
      %p142 = por %p140, %p141
      %p143 = scmp.ne.s32.totalorder %s131, %s132
      %p144 = scmp.eq.s32.totalorder %s21, 31
      %p145 = por %p143, %p144
      %p147 = scmp.ne.s32.totalorder %s132, %s146
      %p148 = scmp.eq.s32.totalorder %s21, 0
      %p149 = por %p147, %p148
      %s151 = sadd.s32 %s150, 1
      %p154 = scmp.eq.s32.totalorder %s15, 31
      %p155 = scmp.ne.s32.totalorder %s150, %s152
      %p156 = scmp.eq.s32.totalorder %s15, 0
      %p157 = por %p155, %p156
      %p158 = scmp.ne.s32.totalorder %s150, %s152
      %p159 = scmp.eq.s32.totalorder %s20, 31
      %p160 = por %p158, %p159
      %p161 = scmp.ne.s32.totalorder %s152, %s153
      %p162 = scmp.eq.s32.totalorder %s20, 0
      %p163 = por %p161, %p162
      %p164 = scmp.ne.s32.totalorder %s152, %s153
      %p165 = scmp.eq.s32.totalorder %s21, 31
      %p166 = por %p164, %p165
      %p168 = scmp.ne.s32.totalorder %s153, %s167
      %p169 = scmp.eq.s32.totalorder %s21, 0
      %p170 = por %p168, %p169
      %s172 = sadd.s32 %s171, 1
      %p175 = scmp.eq.s32.totalorder %s15, 31
      %p176 = scmp.ne.s32.totalorder %s171, %s173
      %p177 = scmp.eq.s32.totalorder %s15, 0
      %p178 = por %p176, %p177
      %p179 = scmp.ne.s32.totalorder %s171, %s173
      %p180 = scmp.eq.s32.totalorder %s20, 31
      %p181 = por %p179, %p180
      %p182 = scmp.ne.s32.totalorder %s173, %s174
      %p183 = scmp.eq.s32.totalorder %s20, 0
      %p184 = por %p182, %p183
      %p185 = scmp.ne.s32.totalorder %s173, %s174
      %p186 = scmp.eq.s32.totalorder %s21, 31
      %p187 = por %p185, %p186
      %p189 = scmp.ne.s32.totalorder %s174, %s188
      %p190 = scmp.eq.s32.totalorder %s21, 0
      %p191 = por %p189, %p190
      %s192 = ssub.s32 %s22, %s34
      %s193 = ssub.s32 %s23, %s30
      %s194 = sor.u32 %s192, %s193
      %p195 = scmp.eq.s32.totalorder %s194, 0
      %s197 = sadd.s32 %s196, 1
      %s198 = scalar_select %p195, %s196, %s197
      %p201 = pneg %p195
      %p202 = scmp.eq.s32.totalorder %s15, 31
      %p203 = por %p201, %p202
      %p204 = scmp.ne.s32.totalorder %s196, %s199
      %p205 = scmp.eq.s32.totalorder %s15, 0
      %p206 = por %p204, %p205
      %p207 = scmp.ne.s32.totalorder %s196, %s199
      %p208 = scmp.eq.s32.totalorder %s20, 31
      %p209 = por %p207, %p208
      %p210 = scmp.ne.s32.totalorder %s199, %s200
      %p211 = scmp.eq.s32.totalorder %s20, 0
      %p212 = por %p210, %p211
      %p213 = scmp.ne.s32.totalorder %s199, %s200
      %p214 = scmp.eq.s32.totalorder %s21, 31
      %p215 = por %p213, %p214
      %p217 = scmp.ne.s32.totalorder %s200, %s216
      %p218 = scmp.eq.s32.totalorder %s21, 0
      %p219 = por %p217, %p218
      %p220 = scmp.le.s32.totalorder 1, %s15
      %p221 = scmp.lt.s32.totalorder %s15, 33
      %p222 = pnand %p220, %p221
      %p223 = pneg %p222
      // Predicated region
      $region9: #{conv_kxk_bn_act.1} parent=5 // pred_check
        _
      $region10: #{conv_kxk_bn_act.1} parent=5 // pred_check_branch
        %225 = sbr.rel (%p222) target = $region12
      $region11: #{conv_kxk_bn_act.1} parent=5 // pred_region
        %s226 = ssub.s32 %s15, 1
        // Predicated region
        $region13: #{conv_kxk_bn_act.1} parent=11 // pred_check
          %p227 = pneg %p142
        $region14: #{conv_kxk_bn_act.1} parent=11 // pred_check_branch
          %229 = sbr.rel (%p227) target = $region16
        $region15: #{conv_kxk_bn_act.1} parent=11 // pred_region
          _
        $region16: #{conv_kxk_bn_act.1} parent=11 // pred_fallthru
          _
        // Predicated region
        $region17: #{conv_kxk_bn_act.1} parent=11 // pred_check
          %p230 = pneg %p163
        $region18: #{conv_kxk_bn_act.1} parent=11 // pred_check_branch
          %232 = sbr.rel (%p230) target = $region20
        $region19: #{conv_kxk_bn_act.1} parent=11 // pred_region
          _
        $region20: #{conv_kxk_bn_act.1} parent=11 // pred_fallthru
          _
        // Predicated region
        $region21: #{conv_kxk_bn_act.1} parent=11 // pred_check
          %p233 = pneg %p184
        $region22: #{conv_kxk_bn_act.1} parent=11 // pred_check_branch
          %235 = sbr.rel (%p233) target = $region24
        $region23: #{conv_kxk_bn_act.1} parent=11 // pred_region
          _
        $region24: #{conv_kxk_bn_act.1} parent=11 // pred_fallthru
          _
      $region12: #{conv_kxk_bn_act.1} parent=5 // pred_fallthru
        _
      %p236 = scmp.lt.s32.totalorder %s15, 32
      // Predicated region
      $region25: #{conv_kxk_bn_act.1} parent=5 // pred_check
        %p237 = pneg %p236
      $region26: #{conv_kxk_bn_act.1} parent=5 // pred_check_branch
        %239 = sbr.rel (%p237) target = $region28
      $region27: #{conv_kxk_bn_act.1} parent=5 // pred_region
        // Predicated region
        $region29: #{conv_kxk_bn_act.1} parent=27 // pred_check
          %p240 = pneg %p51
        $region30: #{conv_kxk_bn_act.1} parent=27 // pred_check_branch
          %242 = sbr.rel (%p240) target = $region32
        $region31: #{conv_kxk_bn_act.1} parent=27 // pred_region
          %s243 = smul.u32 %s23, 2
          %p244 = scmp.lt.s32.totalorder %s22, 1
          %s245 = scalar_select %p244, %s22, 1
          %p246 = scmp.lt.s32.totalorder %s243, 33
          %s247 = scalar_select %p246, %s243, 33
          %s248 = smul.addr %s247, 3
          %s249 = smul.addr %s245, 102
          %s250 = sadd.s32 %s248, %s249
          %s251 = smul.addr %s250, 4
          %s252 = scalar_lea.vmem %s0, %s251
          %s253 = smul.u32 %s23, 2
        $region32: #{conv_kxk_bn_act.1} parent=27 // pred_fallthru
          _
        // Predicated region
        $region33: #{conv_kxk_bn_act.1} parent=27 // pred_check
          %p254 = pneg %p83
        $region34: #{conv_kxk_bn_act.1} parent=27 // pred_check_branch
          %256 = sbr.rel (%p254) target = $region36
        $region35: #{conv_kxk_bn_act.1} parent=27 // pred_region
          %s257 = smul.u32 %s23, 2
          %s258 = sadd.s32 %s257, 1
          %p259 = scmp.lt.s32.totalorder %s22, 1
          %s260 = scalar_select %p259, %s22, 1
          %p261 = scmp.lt.s32.totalorder %s258, 33
          %s262 = scalar_select %p261, %s258, 33
          %s263 = smul.addr %s262, 3
          %s264 = smul.addr %s260, 102
          %s265 = sadd.s32 %s263, %s264
          %s266 = smul.addr %s265, 4
          %s267 = scalar_lea.vmem %s1, %s266
          %s268 = smul.u32 %s23, 2
          %s269 = sadd.s32 %s268, 1
        $region36: #{conv_kxk_bn_act.1} parent=27 // pred_fallthru
          _
        // Predicated region
        $region37: #{conv_kxk_bn_act.1} parent=27 // pred_check
          %p270 = pneg %p115
        $region38: #{conv_kxk_bn_act.1} parent=27 // pred_check_branch
          %272 = sbr.rel (%p270) target = $region40
        $region39: #{conv_kxk_bn_act.1} parent=27 // pred_region
          %s273 = smul.u32 %s23, 2
          %s274 = sadd.s32 %s273, 2
          %p275 = scmp.lt.s32.totalorder %s22, 1
          %s276 = scalar_select %p275, %s22, 1
          %p277 = scmp.lt.s32.totalorder %s274, 33
          %s278 = scalar_select %p277, %s274, 33
          %s279 = smul.addr %s278, 3
          %s280 = smul.addr %s276, 102
          %s281 = sadd.s32 %s279, %s280
          %s282 = smul.addr %s281, 4
          %s283 = scalar_lea.vmem %s2, %s282
          %s284 = smul.u32 %s23, 2
          %s285 = sadd.s32 %s284, 2
        $region40: #{conv_kxk_bn_act.1} parent=27 // pred_fallthru
          _
      $region28: #{conv_kxk_bn_act.1} parent=5 // pred_fallthru
        _
      %p286 = scmp.le.s32.totalorder 1, %s15
      %p287 = scmp.lt.s32.totalorder %s15, 33
      %p288 = pnand %p286, %p287
      %p289 = pneg %p288
      // Predicated region
      $region41: #{conv_kxk_bn_act.1} parent=5 // pred_check
        _
      $region42: #{conv_kxk_bn_act.1} parent=5 // pred_check_branch
        %291 = sbr.rel (%p288) target = $region44
      $region43: #{conv_kxk_bn_act.1} parent=5 // pred_region
        %s292 = ssub.s32 %s15, 1
        %s293 = smul.u32 %s25, 2
        %p294 = scmp.lt.s32.totalorder %s24, 1
        %s295 = scalar_select %p294, %s24, 1
        %p296 = scmp.lt.s32.totalorder %s293, 33
        %s297 = scalar_select %p296, %s293, 33
        %s298 = smul.addr %s297, 3
        %s299 = smul.addr %s295, 102
        %s300 = sadd.s32 %s298, %s299
        %s301 = smul.addr %s300, 4
        %s302 = scalar_lea.vmem %s0, %s301
        %p303 = pneg %p57
        %p304 = pneg %p54
        %s305 = smul.u32 %s25, 2
        %s306 = sadd.s32 %s305, 1
        %p307 = scmp.lt.s32.totalorder %s24, 1
        %s308 = scalar_select %p307, %s24, 1
        %p309 = scmp.lt.s32.totalorder %s306, 33
        %s310 = scalar_select %p309, %s306, 33
        %s311 = smul.addr %s310, 3
        %s312 = smul.addr %s308, 102
        %s313 = sadd.s32 %s311, %s312
        %s314 = smul.addr %s313, 4
        %s315 = scalar_lea.vmem %s1, %s314
        %p316 = pneg %p89
        %p317 = pneg %p86
        %s318 = smul.u32 %s25, 2
        %s319 = sadd.s32 %s318, 2
        %p320 = scmp.lt.s32.totalorder %s24, 1
        %s321 = scalar_select %p320, %s24, 1
        %p322 = scmp.lt.s32.totalorder %s319, 33
        %s323 = scalar_select %p322, %s319, 33
        %s324 = smul.addr %s323, 3
        %s325 = smul.addr %s321, 102
        %s326 = sadd.s32 %s324, %s325
        %s327 = smul.addr %s326, 4
        %s328 = scalar_lea.vmem %s2, %s327
        %p329 = pneg %p121
        %p330 = pneg %p118
        %p331 = pneg %p142
        %p332 = pneg %p139
        %p333 = pneg %p163
        %p334 = pneg %p160
        %p335 = pneg %p184
        %p336 = pneg %p181
        %p337 = pneg %p212
        %p338 = pneg %p209
        %s339 = sand.u32 %s199, 1
        %s340 = scalar_lea.sflag [#allocation3], %s339
        %s341 = sand.u32 %s199, 1
        %s342 = smul.addr %s341, 8
        %s343 = scalar_lea.vmem [#allocation2], %s342
        %s344 = smul.u32 %s25, 2
        %p345 = scmp.lt.s32.totalorder %s24, 1
        %s346 = scalar_select %p345, %s24, 1
        %p347 = scmp.lt.s32.totalorder %s344, 33
        %s348 = scalar_select %p347, %s344, 33
        %s349 = smul.addr %s348, 3
        %s350 = smul.addr %s346, 102
        %s351 = sadd.s32 %s349, %s350
        %s352 = smul.addr %s351, 4
        %s353 = scalar_lea.vmem %s0, %s352
        %s354 = smul.u32 %s25, 2
        %s355 = smul.u32 %s25, 2
        %s356 = sadd.s32 %s355, 1
        %p357 = scmp.lt.s32.totalorder %s24, 1
        %s358 = scalar_select %p357, %s24, 1
        %p359 = scmp.lt.s32.totalorder %s356, 33
        %s360 = scalar_select %p359, %s356, 33
        %s361 = smul.addr %s360, 3
        %s362 = smul.addr %s358, 102
        %s363 = sadd.s32 %s361, %s362
        %s364 = smul.addr %s363, 4
        %s365 = scalar_lea.vmem %s1, %s364
        %s366 = smul.u32 %s25, 2
        %s367 = sadd.s32 %s366, 1
        %s368 = smul.u32 %s25, 2
        %s369 = sadd.s32 %s368, 2
        %p370 = scmp.lt.s32.totalorder %s24, 1
        %s371 = scalar_select %p370, %s24, 1
        %p372 = scmp.lt.s32.totalorder %s369, 33
        %s373 = scalar_select %p372, %s369, 33
        %s374 = smul.addr %s373, 3
        %s375 = smul.addr %s371, 102
        %s376 = sadd.s32 %s374, %s375
        %s377 = smul.addr %s376, 4
        %s378 = scalar_lea.vmem %s2, %s377
        %s379 = smul.u32 %s25, 2
        %s380 = sadd.s32 %s379, 2
        %v382 = vld [vmem:[%s353] sm:$0xf]
        %v383 = vld [vmem:[%s353 + $0x4] sm:$0xf]
        %v384 = vld [vmem:[%s3] sm:$0xf]
        %s385 = scalar_lea.vmem %s3, 4
        %v386 = vld [vmem:[%s385] sm:$0xf]
        %v389 = vunpack.c.l.b16 %v382
        %v390 = vunpack.c.l.b16 %v383
        %v391 = vpack.c.b16 %v390, %v389
        %392 = vrot.lane.b32.xlu0 %v391, 120
        %v393 = vpop.permute.xlu0 %392
        %vm394 = vcmask 64512
        %v396 = vsel %vm394, %v393, 0
        %vm398 = vcmask 1043456
        %v400 = vsel %vm398, %v386, 0
        %402 = vmatprep.subr.bf16.mxu0 0
        %403 = vmatpush1.bf16.msra.mxu0 %v400
        %404 = vmatprep.subr.bf16.mxu0 0
        %405 = vmatpush1.bf16.msra.mxu0 0
        %406 = vmatprep.subr.bf16.mxu0 0
        %407 = vmatpush1.bf16.msra.mxu0 0
        %408 = vmatprep.subr.bf16.mxu0 0
        %409 = vmatpush1.bf16.msra.mxu0 0
        %410 = vmatprep.subr.bf16.mxu0 0
        %411 = vmatpush1.bf16.msra.mxu0 0
        %412 = vmatprep.subr.bf16.mxu0 0
        %413 = vmatpush1.bf16.msra.mxu0 0
        %414 = vmatprep.subr.bf16.mxu0 0
        %415 = vmatpush1.bf16.msra.mxu0 0
        %416 = vmatprep.subr.bf16.mxu0 0
        %417 = vmatpush1.bf16.msra.mxu0 0
        %418 = vmatprep.subr.bf16.mxu0 0
        %419 = vmatpush1.bf16.msra.mxu0 0
        %420 = vmatprep.subr.bf16.mxu0 0
        %421 = vmatpush1.bf16.msra.mxu0 0
        %422 = vmatprep.subr.bf16.mxu0 0
        %423 = vmatpush1.bf16.msra.mxu0 0
        %424 = vmatprep.subr.bf16.mxu0 0
        %425 = vmatpush1.bf16.msra.mxu0 0
        %426 = vmatprep.subr.bf16.mxu0 0
        %427 = vmatpush1.bf16.msra.mxu0 0
        %428 = vmatprep.subr.bf16.mxu0 0
        %429 = vmatpush1.bf16.msra.mxu0 0
        %430 = vmatprep.subr.bf16.mxu0 0
        %431 = vmatpush1.bf16.msra.mxu0 0
        %432 = vmatprep.subr.bf16.mxu0 0
        %433 = vmatpush1.bf16.msra.mxu0 0
        %434 = vmatprep.mubr.bf16.mxu0 0
        %435 = vmatmul.mubr.bf16.gmra.mrb[0].mxu0 %v396
        %v436 = vpop.f32.mrb[0].mxu0
        %v437 = vadd.f32 0.0, %v436
        %v438 = vpop.f32.mrb[0].mxu0
        %v439 = vpop.f32.mrb[0].mxu0
        %v440 = vadd.f32 0.0, %v439
        %v441 = vpop.f32.mrb[0].mxu0
        %442 = vdwg.mxu0
        %v444 = vsel %vm394, %v391, 0
        %v447 = vsel %vm398, %v384, 0
        %449 = vmatprep.subr.bf16.mxu0 0
        %450 = vmatpush1.bf16.msra.mxu0 %v447
        %451 = vmatprep.subr.bf16.mxu0 0
        %452 = vmatpush1.bf16.msra.mxu0 0
        %453 = vmatprep.subr.bf16.mxu0 0
        %454 = vmatpush1.bf16.msra.mxu0 0
        %455 = vmatprep.subr.bf16.mxu0 0
        %456 = vmatpush1.bf16.msra.mxu0 0
        %457 = vmatprep.subr.bf16.mxu0 0
        %458 = vmatpush1.bf16.msra.mxu0 0
        %459 = vmatprep.subr.bf16.mxu0 0
        %460 = vmatpush1.bf16.msra.mxu0 0
        %461 = vmatprep.subr.bf16.mxu0 0
        %462 = vmatpush1.bf16.msra.mxu0 0
        %463 = vmatprep.subr.bf16.mxu0 0
        %464 = vmatpush1.bf16.msra.mxu0 0
        %465 = vmatprep.subr.bf16.mxu0 0
        %466 = vmatpush1.bf16.msra.mxu0 0
        %467 = vmatprep.subr.bf16.mxu0 0
        %468 = vmatpush1.bf16.msra.mxu0 0
        %469 = vmatprep.subr.bf16.mxu0 0
        %470 = vmatpush1.bf16.msra.mxu0 0
        %471 = vmatprep.subr.bf16.mxu0 0
        %472 = vmatpush1.bf16.msra.mxu0 0
        %473 = vmatprep.subr.bf16.mxu0 0
        %474 = vmatpush1.bf16.msra.mxu0 0
        %475 = vmatprep.subr.bf16.mxu0 0
        %476 = vmatpush1.bf16.msra.mxu0 0
        %477 = vmatprep.subr.bf16.mxu0 0
        %478 = vmatpush1.bf16.msra.mxu0 0
        %479 = vmatprep.subr.bf16.mxu0 0
        %480 = vmatpush1.bf16.msra.mxu0 0
        %481 = vmatprep.mubr.bf16.mxu0 0
        %482 = vmatmul.mubr.bf16.gmra.mrb[0].mxu0 %v444
        %v483 = vpop.f32.mrb[0].mxu0
        %v484 = vadd.f32 %v437, %v483
        %v485 = vpop.f32.mrb[0].mxu0
        %v486 = vpop.f32.mrb[0].mxu0
        %v487 = vadd.f32 %v440, %v486
        %v488 = vpop.f32.mrb[0].mxu0
        %489 = vdwg.mxu0
        %v490 = vld [vmem:[%s353] sm:$0xf]
        %v491 = vld [vmem:[%s353 + $0x4] sm:$0xf]
        %v492 = vld [vmem:[%s353 + $0x8] sm:$0x1]
        %s493 = scalar_lea.vmem %s3, 8
        %v494 = vld [vmem:[%s493] sm:$0xf]
        %v498 = vunpack.c.l.b16 %v490
        %v499 = vunpack.c.l.b16 %v491
        %v500 = vunpack.c.l.b16 %v492
        %v501 = vpack.c.b16 %v499, %v498
        %v502 = vpack.c.b16 %v500, %v500
        %vm503 = vsmask.f32 7424
        %v505 = vshrl.u32 %v501, 16
        %v507 = vshll.u32 %v501, 16
        %v509 = vrot.slane %v507, 1
        %v510 = vor.u32 %v505, %v509
        %v512 = vshll.u32 %v502, 16
        %v514 = vrot.slane %v512, 1
        %v515 = vsel %vm503, %v510, %v514
        %v517 = vsel %vm394, %v515, 0
        %v520 = vsel %vm398, %v494, 0
        %522 = vmatprep.subr.bf16.mxu0 0
        %523 = vmatpush1.bf16.msra.mxu0 %v520
        %524 = vmatprep.subr.bf16.mxu0 0
        %525 = vmatpush1.bf16.msra.mxu0 0
        %526 = vmatprep.subr.bf16.mxu0 0
        %527 = vmatpush1.bf16.msra.mxu0 0
        %528 = vmatprep.subr.bf16.mxu0 0
        %529 = vmatpush1.bf16.msra.mxu0 0
        %530 = vmatprep.subr.bf16.mxu0 0
        %531 = vmatpush1.bf16.msra.mxu0 0
        %532 = vmatprep.subr.bf16.mxu0 0
        %533 = vmatpush1.bf16.msra.mxu0 0
        %534 = vmatprep.subr.bf16.mxu0 0
        %535 = vmatpush1.bf16.msra.mxu0 0
        %536 = vmatprep.subr.bf16.mxu0 0
        %537 = vmatpush1.bf16.msra.mxu0 0
        %538 = vmatprep.subr.bf16.mxu0 0
        %539 = vmatpush1.bf16.msra.mxu0 0
        %540 = vmatprep.subr.bf16.mxu0 0
        %541 = vmatpush1.bf16.msra.mxu0 0
        %542 = vmatprep.subr.bf16.mxu0 0
        %543 = vmatpush1.bf16.msra.mxu0 0
        %544 = vmatprep.subr.bf16.mxu0 0
        %545 = vmatpush1.bf16.msra.mxu0 0
        %546 = vmatprep.subr.bf16.mxu0 0
        %547 = vmatpush1.bf16.msra.mxu0 0
        %548 = vmatprep.subr.bf16.mxu0 0
        %549 = vmatpush1.bf16.msra.mxu0 0
        %550 = vmatprep.subr.bf16.mxu0 0
        %551 = vmatpush1.bf16.msra.mxu0 0
        %552 = vmatprep.subr.bf16.mxu0 0
        %553 = vmatpush1.bf16.msra.mxu0 0
        %554 = vmatprep.mubr.bf16.mxu0 0
        %555 = vmatmul.mubr.bf16.gmra.mrb[0].mxu0 %v517
        %v556 = vpop.f32.mrb[0].mxu0
        %v557 = vadd.f32 0.0, %v556
        %v558 = vpop.f32.mrb[0].mxu0
        %v559 = vpop.f32.mrb[0].mxu0
        %v560 = vadd.f32 0.0, %v559
        %v561 = vpop.f32.mrb[0].mxu0
        %562 = vdwg.mxu0
        %v563 = vadd.f32 %v484, %v557
        %v564 = vadd.f32 %v487, %v560
        %v565 = vld [vmem:[%s365] sm:$0xf]
        %v566 = vld [vmem:[%s365 + $0x4] sm:$0xf]
        %s567 = scalar_lea.vmem %s3, 12
        %v568 = vld [vmem:[%s567] sm:$0xf]
        %v571 = vunpack.c.l.b16 %v565
        %v572 = vunpack.c.l.b16 %v566
        %v573 = vpack.c.b16 %v572, %v571
        %v575 = vsel %vm394, %v573, 0
        %v578 = vsel %vm398, %v568, 0
        %580 = vmatprep.subr.bf16.mxu0 0
        %581 = vmatpush1.bf16.msra.mxu0 %v578
        %582 = vmatprep.subr.bf16.mxu0 0
        %583 = vmatpush1.bf16.msra.mxu0 0
        %584 = vmatprep.subr.bf16.mxu0 0
        %585 = vmatpush1.bf16.msra.mxu0 0
        %586 = vmatprep.subr.bf16.mxu0 0
        %587 = vmatpush1.bf16.msra.mxu0 0
        %588 = vmatprep.subr.bf16.mxu0 0
        %589 = vmatpush1.bf16.msra.mxu0 0
        %590 = vmatprep.subr.bf16.mxu0 0
        %591 = vmatpush1.bf16.msra.mxu0 0
        %592 = vmatprep.subr.bf16.mxu0 0
        %593 = vmatpush1.bf16.msra.mxu0 0
        %594 = vmatprep.subr.bf16.mxu0 0
        %595 = vmatpush1.bf16.msra.mxu0 0
        %596 = vmatprep.subr.bf16.mxu0 0
        %597 = vmatpush1.bf16.msra.mxu0 0
        %598 = vmatprep.subr.bf16.mxu0 0
        %599 = vmatpush1.bf16.msra.mxu0 0
        %600 = vmatprep.subr.bf16.mxu0 0
        %601 = vmatpush1.bf16.msra.mxu0 0
        %602 = vmatprep.subr.bf16.mxu0 0
        %603 = vmatpush1.bf16.msra.mxu0 0
        %604 = vmatprep.subr.bf16.mxu0 0
        %605 = vmatpush1.bf16.msra.mxu0 0
        %606 = vmatprep.subr.bf16.mxu0 0
        %607 = vmatpush1.bf16.msra.mxu0 0
        %608 = vmatprep.subr.bf16.mxu0 0
        %609 = vmatpush1.bf16.msra.mxu0 0
        %610 = vmatprep.subr.bf16.mxu0 0
        %611 = vmatpush1.bf16.msra.mxu0 0
        %612 = vmatprep.mubr.bf16.mxu0 0
        %613 = vmatmul.mubr.bf16.gmra.mrb[0].mxu0 %v575
        %v614 = vpop.f32.mrb[0].mxu0
        %v615 = vadd.f32 0.0, %v614
        %v616 = vpop.f32.mrb[0].mxu0
        %v617 = vpop.f32.mrb[0].mxu0
        %v618 = vadd.f32 0.0, %v617
        %v619 = vpop.f32.mrb[0].mxu0
        %620 = vdwg.mxu0
        %v621 = vadd.f32 %v563, %v615
        %v622 = vadd.f32 %v564, %v618
        %s623 = scalar_lea.vmem %s3, 16
        %v624 = vld [vmem:[%s623] sm:$0xf]
        %625 = vrot.lane.b32.xlu0 %v573, 120
        %v626 = vpop.permute.xlu0 %625
        %v628 = vsel %vm394, %v626, 0
        %v631 = vsel %vm398, %v624, 0
        %633 = vmatprep.subr.bf16.mxu0 0
        %634 = vmatpush1.bf16.msra.mxu0 %v631
        %635 = vmatprep.subr.bf16.mxu0 0
        %636 = vmatpush1.bf16.msra.mxu0 0
        %637 = vmatprep.subr.bf16.mxu0 0
        %638 = vmatpush1.bf16.msra.mxu0 0
        %639 = vmatprep.subr.bf16.mxu0 0
        %640 = vmatpush1.bf16.msra.mxu0 0
        %641 = vmatprep.subr.bf16.mxu0 0
        %642 = vmatpush1.bf16.msra.mxu0 0
        %643 = vmatprep.subr.bf16.mxu0 0
        %644 = vmatpush1.bf16.msra.mxu0 0
        %645 = vmatprep.subr.bf16.mxu0 0
        %646 = vmatpush1.bf16.msra.mxu0 0
        %647 = vmatprep.subr.bf16.mxu0 0
        %648 = vmatpush1.bf16.msra.mxu0 0
        %649 = vmatprep.subr.bf16.mxu0 0
        %650 = vmatpush1.bf16.msra.mxu0 0
        %651 = vmatprep.subr.bf16.mxu0 0
        %652 = vmatpush1.bf16.msra.mxu0 0
        %653 = vmatprep.subr.bf16.mxu0 0
        %654 = vmatpush1.bf16.msra.mxu0 0
        %655 = vmatprep.subr.bf16.mxu0 0
        %656 = vmatpush1.bf16.msra.mxu0 0
        %657 = vmatprep.subr.bf16.mxu0 0
        %658 = vmatpush1.bf16.msra.mxu0 0
        %659 = vmatprep.subr.bf16.mxu0 0
        %660 = vmatpush1.bf16.msra.mxu0 0
        %661 = vmatprep.subr.bf16.mxu0 0
        %662 = vmatpush1.bf16.msra.mxu0 0
        %663 = vmatprep.subr.bf16.mxu0 0
        %664 = vmatpush1.bf16.msra.mxu0 0
        %665 = vmatprep.mubr.bf16.mxu0 0
        %666 = vmatmul.mubr.bf16.gmra.mrb[0].mxu0 %v628
        %v667 = vpop.f32.mrb[0].mxu0
        %v668 = vadd.f32 0.0, %v667
        %v669 = vpop.f32.mrb[0].mxu0
        %v670 = vpop.f32.mrb[0].mxu0
        %v671 = vadd.f32 0.0, %v670
        %v672 = vpop.f32.mrb[0].mxu0
        %673 = vdwg.mxu0
        %v674 = vadd.f32 %v621, %v668
        %v675 = vadd.f32 %v622, %v671
        %v676 = vld [vmem:[%s365] sm:$0xf]
        %v677 = vld [vmem:[%s365 + $0x4] sm:$0xf]
        %v678 = vld [vmem:[%s365 + $0x8] sm:$0x1]
        %s679 = scalar_lea.vmem %s3, 20
        %v680 = vld [vmem:[%s679] sm:$0xf]
        %v684 = vunpack.c.l.b16 %v676
        %v685 = vunpack.c.l.b16 %v677
        %v686 = vunpack.c.l.b16 %v678
        %v687 = vpack.c.b16 %v685, %v684
        %v688 = vpack.c.b16 %v686, %v686
        %v690 = vshrl.u32 %v687, 16
        %v692 = vshll.u32 %v687, 16
        %v694 = vrot.slane %v692, 1
        %v695 = vor.u32 %v690, %v694
        %v697 = vshll.u32 %v688, 16
        %v699 = vrot.slane %v697, 1
        %v700 = vsel %vm503, %v695, %v699
        %v702 = vsel %vm394, %v700, 0
        %v705 = vsel %vm398, %v680, 0
        %707 = vmatprep.subr.bf16.mxu0 0
        %708 = vmatpush1.bf16.msra.mxu0 %v705
        %709 = vmatprep.subr.bf16.mxu0 0
        %710 = vmatpush1.bf16.msra.mxu0 0
        %711 = vmatprep.subr.bf16.mxu0 0
        %712 = vmatpush1.bf16.msra.mxu0 0
        %713 = vmatprep.subr.bf16.mxu0 0
        %714 = vmatpush1.bf16.msra.mxu0 0
        %715 = vmatprep.subr.bf16.mxu0 0
        %716 = vmatpush1.bf16.msra.mxu0 0
        %717 = vmatprep.subr.bf16.mxu0 0
        %718 = vmatpush1.bf16.msra.mxu0 0
        %719 = vmatprep.subr.bf16.mxu0 0
        %720 = vmatpush1.bf16.msra.mxu0 0
        %721 = vmatprep.subr.bf16.mxu0 0
        %722 = vmatpush1.bf16.msra.mxu0 0
        %723 = vmatprep.subr.bf16.mxu0 0
        %724 = vmatpush1.bf16.msra.mxu0 0
        %725 = vmatprep.subr.bf16.mxu0 0
        %726 = vmatpush1.bf16.msra.mxu0 0
        %727 = vmatprep.subr.bf16.mxu0 0
        %728 = vmatpush1.bf16.msra.mxu0 0
        %729 = vmatprep.subr.bf16.mxu0 0
        %730 = vmatpush1.bf16.msra.mxu0 0
        %731 = vmatprep.subr.bf16.mxu0 0
        %732 = vmatpush1.bf16.msra.mxu0 0
        %733 = vmatprep.subr.bf16.mxu0 0
        %734 = vmatpush1.bf16.msra.mxu0 0
        %735 = vmatprep.subr.bf16.mxu0 0
        %736 = vmatpush1.bf16.msra.mxu0 0
        %737 = vmatprep.subr.bf16.mxu0 0
        %738 = vmatpush1.bf16.msra.mxu0 0
        %739 = vmatprep.mubr.bf16.mxu0 0
        %740 = vmatmul.mubr.bf16.gmra.mrb[0].mxu0 %v702
        %v741 = vpop.f32.mrb[0].mxu0
        %v742 = vadd.f32 0.0, %v741
        %v743 = vpop.f32.mrb[0].mxu0
        %v744 = vpop.f32.mrb[0].mxu0
        %v745 = vadd.f32 0.0, %v744
        %v746 = vpop.f32.mrb[0].mxu0
        %747 = vdwg.mxu0
        %v748 = vadd.f32 %v674, %v742
        %v749 = vadd.f32 %v675, %v745
        %v750 = vld [vmem:[%s378] sm:$0xf]
        %v751 = vld [vmem:[%s378 + $0x4] sm:$0xf]
        %s752 = scalar_lea.vmem %s3, 24
        %v753 = vld [vmem:[%s752] sm:$0xf]
        %v756 = vunpack.c.l.b16 %v750
        %v757 = vunpack.c.l.b16 %v751
        %v758 = vpack.c.b16 %v757, %v756
        %v760 = vsel %vm394, %v758, 0
        %v763 = vsel %vm398, %v753, 0
        %765 = vmatprep.subr.bf16.mxu0 0
        %766 = vmatpush1.bf16.msra.mxu0 %v763
        %767 = vmatprep.subr.bf16.mxu0 0
        %768 = vmatpush1.bf16.msra.mxu0 0
        %769 = vmatprep.subr.bf16.mxu0 0
        %770 = vmatpush1.bf16.msra.mxu0 0
        %771 = vmatprep.subr.bf16.mxu0 0
        %772 = vmatpush1.bf16.msra.mxu0 0
        %773 = vmatprep.subr.bf16.mxu0 0
        %774 = vmatpush1.bf16.msra.mxu0 0
        %775 = vmatprep.subr.bf16.mxu0 0
        %776 = vmatpush1.bf16.msra.mxu0 0
        %777 = vmatprep.subr.bf16.mxu0 0
        %778 = vmatpush1.bf16.msra.mxu0 0
        %779 = vmatprep.subr.bf16.mxu0 0
        %780 = vmatpush1.bf16.msra.mxu0 0
        %781 = vmatprep.subr.bf16.mxu0 0
        %782 = vmatpush1.bf16.msra.mxu0 0
        %783 = vmatprep.subr.bf16.mxu0 0
        %784 = vmatpush1.bf16.msra.mxu0 0
        %785 = vmatprep.subr.bf16.mxu0 0
        %786 = vmatpush1.bf16.msra.mxu0 0
        %787 = vmatprep.subr.bf16.mxu0 0
        %788 = vmatpush1.bf16.msra.mxu0 0
        %789 = vmatprep.subr.bf16.mxu0 0
        %790 = vmatpush1.bf16.msra.mxu0 0
        %791 = vmatprep.subr.bf16.mxu0 0
        %792 = vmatpush1.bf16.msra.mxu0 0
        %793 = vmatprep.subr.bf16.mxu0 0
        %794 = vmatpush1.bf16.msra.mxu0 0
        %795 = vmatprep.subr.bf16.mxu0 0
        %796 = vmatpush1.bf16.msra.mxu0 0
        %797 = vmatprep.mubr.bf16.mxu0 0
        %798 = vmatmul.mubr.bf16.gmra.mrb[0].mxu0 %v760
        %v799 = vpop.f32.mrb[0].mxu0
        %v800 = vadd.f32 0.0, %v799
        %v801 = vpop.f32.mrb[0].mxu0
        %v802 = vpop.f32.mrb[0].mxu0
        %v803 = vadd.f32 0.0, %v802
        %v804 = vpop.f32.mrb[0].mxu0
        %805 = vdwg.mxu0
        %v806 = vadd.f32 %v748, %v800
        %v807 = vadd.f32 %v749, %v803
        %s808 = scalar_lea.vmem %s3, 28
        %v809 = vld [vmem:[%s808] sm:$0xf]
        %810 = vrot.lane.b32.xlu0 %v758, 120
        %v811 = vpop.permute.xlu0 %810
        %v813 = vsel %vm394, %v811, 0
        %v816 = vsel %vm398, %v809, 0
        %818 = vmatprep.subr.bf16.mxu0 0
        %819 = vmatpush1.bf16.msra.mxu0 %v816
        %820 = vmatprep.subr.bf16.mxu0 0
        %821 = vmatpush1.bf16.msra.mxu0 0
        %822 = vmatprep.subr.bf16.mxu0 0
        %823 = vmatpush1.bf16.msra.mxu0 0
        %824 = vmatprep.subr.bf16.mxu0 0
        %825 = vmatpush1.bf16.msra.mxu0 0
        %826 = vmatprep.subr.bf16.mxu0 0
        %827 = vmatpush1.bf16.msra.mxu0 0
        %828 = vmatprep.subr.bf16.mxu0 0
        %829 = vmatpush1.bf16.msra.mxu0 0
        %830 = vmatprep.subr.bf16.mxu0 0
        %831 = vmatpush1.bf16.msra.mxu0 0
        %832 = vmatprep.subr.bf16.mxu0 0
        %833 = vmatpush1.bf16.msra.mxu0 0
        %834 = vmatprep.subr.bf16.mxu0 0
        %835 = vmatpush1.bf16.msra.mxu0 0
        %836 = vmatprep.subr.bf16.mxu0 0
        %837 = vmatpush1.bf16.msra.mxu0 0
        %838 = vmatprep.subr.bf16.mxu0 0
        %839 = vmatpush1.bf16.msra.mxu0 0
        %840 = vmatprep.subr.bf16.mxu0 0
        %841 = vmatpush1.bf16.msra.mxu0 0
        %842 = vmatprep.subr.bf16.mxu0 0
        %843 = vmatpush1.bf16.msra.mxu0 0
        %844 = vmatprep.subr.bf16.mxu0 0
        %845 = vmatpush1.bf16.msra.mxu0 0
        %846 = vmatprep.subr.bf16.mxu0 0
        %847 = vmatpush1.bf16.msra.mxu0 0
        %848 = vmatprep.subr.bf16.mxu0 0
        %849 = vmatpush1.bf16.msra.mxu0 0
        %850 = vmatprep.mubr.bf16.mxu0 0
        %851 = vmatmul.mubr.bf16.gmra.mrb[0].mxu0 %v813
        %v852 = vpop.f32.mrb[0].mxu0
        %v853 = vadd.f32 0.0, %v852
        %v854 = vpop.f32.mrb[0].mxu0
        %v855 = vpop.f32.mrb[0].mxu0
        %v856 = vadd.f32 0.0, %v855
        %v857 = vpop.f32.mrb[0].mxu0
        %858 = vdwg.mxu0
        %v859 = vadd.f32 %v806, %v853
        %v860 = vadd.f32 %v807, %v856
        %v861 = vld [vmem:[%s378] sm:$0xf]
        %v862 = vld [vmem:[%s378 + $0x4] sm:$0xf]
        %v863 = vld [vmem:[%s378 + $0x8] sm:$0x1]
        %s864 = scalar_lea.vmem %s3, 32
        %v865 = vld [vmem:[%s864] sm:$0xf]
        %v869 = vunpack.c.l.b16 %v861
        %v870 = vunpack.c.l.b16 %v862
        %v871 = vunpack.c.l.b16 %v863
        %v872 = vpack.c.b16 %v870, %v869
        %v873 = vpack.c.b16 %v871, %v871
        %v875 = vshrl.u32 %v872, 16
        %v877 = vshll.u32 %v872, 16
        %v879 = vrot.slane %v877, 1
        %v880 = vor.u32 %v875, %v879
        %v882 = vshll.u32 %v873, 16
        %v884 = vrot.slane %v882, 1
        %v885 = vsel %vm503, %v880, %v884
        %v887 = vsel %vm394, %v885, 0
        %v890 = vsel %vm398, %v865, 0
        %892 = vmatprep.subr.bf16.mxu0 0
        %893 = vmatpush1.bf16.msra.mxu0 %v890
        %894 = vmatprep.subr.bf16.mxu0 0
        %895 = vmatpush1.bf16.msra.mxu0 0
        %896 = vmatprep.subr.bf16.mxu0 0
        %897 = vmatpush1.bf16.msra.mxu0 0
        %898 = vmatprep.subr.bf16.mxu0 0
        %899 = vmatpush1.bf16.msra.mxu0 0
        %900 = vmatprep.subr.bf16.mxu0 0
        %901 = vmatpush1.bf16.msra.mxu0 0
        %902 = vmatprep.subr.bf16.mxu0 0
        %903 = vmatpush1.bf16.msra.mxu0 0
        %904 = vmatprep.subr.bf16.mxu0 0
        %905 = vmatpush1.bf16.msra.mxu0 0
        %906 = vmatprep.subr.bf16.mxu0 0
        %907 = vmatpush1.bf16.msra.mxu0 0
        %908 = vmatprep.subr.bf16.mxu0 0
        %909 = vmatpush1.bf16.msra.mxu0 0
        %910 = vmatprep.subr.bf16.mxu0 0
        %911 = vmatpush1.bf16.msra.mxu0 0
        %912 = vmatprep.subr.bf16.mxu0 0
        %913 = vmatpush1.bf16.msra.mxu0 0
        %914 = vmatprep.subr.bf16.mxu0 0
        %915 = vmatpush1.bf16.msra.mxu0 0
        %916 = vmatprep.subr.bf16.mxu0 0
        %917 = vmatpush1.bf16.msra.mxu0 0
        %918 = vmatprep.subr.bf16.mxu0 0
        %919 = vmatpush1.bf16.msra.mxu0 0
        %920 = vmatprep.subr.bf16.mxu0 0
        %921 = vmatpush1.bf16.msra.mxu0 0
        %922 = vmatprep.subr.bf16.mxu0 0
        %923 = vmatpush1.bf16.msra.mxu0 0
        %924 = vmatprep.mubr.bf16.mxu0 0
        %925 = vmatmul.mubr.bf16.gmra.mrb[0].mxu0 %v887
        %v926 = vpop.f32.mrb[0].mxu0
        %v927 = vadd.f32 0.0, %v926
        %v928 = vpop.f32.mrb[0].mxu0
        %v929 = vpop.f32.mrb[0].mxu0
        %v930 = vadd.f32 0.0, %v929
        %v931 = vpop.f32.mrb[0].mxu0
        %932 = vdwg.mxu0
        %v933 = vadd.f32 %v859, %v927
        %v934 = vadd.f32 %v860, %v930
        %v935 = vld [vmem:[%s4] sm:$0x1]
        %v937 = vlaneseq
        %v938 = vshrl.u32 %v937, 7
        %v939 = vsub.s32 0, %v938
        %v940 = vrot.slane %v935, %v939
        %v942 = vmul.f32 %v933, %v940
        %v943 = vmul.f32 %v934, %v940
        %v944 = vld [vmem:[%s5] sm:$0x1]
        %v946 = vlaneseq
        %v947 = vshrl.u32 %v946, 7
        %v948 = vsub.s32 0, %v947
        %v949 = vrot.slane %v944, %v948
        %v951 = vadd.f32 %v942, %v949
        %v952 = vadd.f32 %v943, %v949
        %v953 = vadd.f32 %v951, 3.0
        %v954 = vadd.f32 %v952, 3.0
        %v955 = vmax.f32 %v953, 0.0
        %v956 = vmax.f32 %v954, 0.0
        %v957 = vmin.f32 %v955, 6.0
        %v958 = vmin.f32 %v956, 6.0
        %v959 = vmul.f32 %v957, 0.16666667
        %v960 = vmul.f32 %v958, 0.16666667
        %v961 = vmul.f32 %v951, %v959
        %v962 = vmul.f32 %v952, %v960
        %v963 = vpack.c.bf16 %v962, %v961
        %v965 = vunpack.c.l.b16 %v963
        %v966 = vunpack.c.h.b16 %v963
        %v967 = vpack.c.b16 %v965, %v965
        %v968 = vpack.c.b16 %v966, %v966
        %vm971 = vcmask 125952
        %972 = vst.msk [vmem:[%s343] sm:$0xf] %vm971, %v967
        %973 = vst.msk [vmem:[%s343 + $0x4] sm:$0xf] %vm971, %v968
        %s974 = sand.u32 %s199, 1
        %s975 = scalar_lea.sflag [#allocation3], %s974
        %s976 = sand.u32 %s199, 1
        %s977 = smul.addr %s976, 8
        %s978 = scalar_lea.vmem [#allocation2], %s977
        // Predicated region
        $region45: #{conv_kxk_bn_act.1} parent=43 // pred_check
          %p979 = pneg %p209
        $region46: #{conv_kxk_bn_act.1} parent=43 // pred_check_branch
          %981 = sbr.rel (%p979) target = $region48
        $region47: #{conv_kxk_bn_act.1} parent=43 // pred_region
          %s983 = ssub.s32 128, 128
          %984 = vsyncadd %s975, %s983
          %s985 = smul.addr %s25, 2
          %s986 = smul.addr %s24, 32
          %s987 = sadd.s32 %s985, %s986
          %s988 = smul.addr %s987, 64
          %s989 = scalar_lea.hbm %s6, %s988
          %s990 = sshll.u32 %s978, 4
          %s991 = int_to_ptr.vmem [resolvable:$true] %s990
          %996 = dma.vmem_to_hbm [thread:$0]  %s991, 128, %s989, %s975, 64, 64, 4
        $region48: #{conv_kxk_bn_act.1} parent=43 // pred_fallthru
          _
      $region44: #{conv_kxk_bn_act.1} parent=5 // pred_fallthru
        _
      %p997 = scmp.le.s32.totalorder 2, %s15
      // Predicated region
      $region49: #{conv_kxk_bn_act.1} parent=5 // pred_check
        %p998 = pneg %p997
      $region50: #{conv_kxk_bn_act.1} parent=5 // pred_check_branch
        %1000 = sbr.rel (%p998) target = $region52
      $region51: #{conv_kxk_bn_act.1} parent=5 // pred_region
        %s1001 = ssub.s32 %s15, 2
        // Predicated region
        $region53: #{conv_kxk_bn_act.1} parent=51 // pred_check
          %p1002 = pneg %p215
        $region54: #{conv_kxk_bn_act.1} parent=51 // pred_check_branch
          %1004 = sbr.rel (%p1002) target = $region56
        $region55: #{conv_kxk_bn_act.1} parent=51 // pred_region
          %s1005 = sand.u32 %s200, 1
          %s1006 = scalar_lea.sflag [#allocation3], %s1005
          %s1007 = sand.u32 %s200, 1
          %s1008 = smul.addr %s1007, 8
          %s1009 = scalar_lea.vmem [#allocation2], %s1008
          %1010 = dma.done %s1006, 128
        $region56: #{conv_kxk_bn_act.1} parent=51 // pred_fallthru
          _
      $region52: #{conv_kxk_bn_act.1} parent=5 // pred_fallthru
        _
    $region6: #{conv_kxk_bn_act.1} parent=1 // loop_footer
      %s19 = sadd.s32 1, %s15
    $region7: #{conv_kxk_bn_act.1} parent=1 // loop_footer_branch
      %14 = sbr.rel target = $region3
    $region8: #{conv_kxk_bn_act.1} parent=1 // loop_exit
      _
    %1011 = vsyncpa [#allocation3], 1
    %s1012 = scalar_lea.sflag [#allocation3], 1
    %1013 = vsyncpa %s1012, 1

</llo_original>
